<compile_context>
chip_gen: v7x
topology: tpu7x:2x2x1
jax: 0.10.0
libtpu: 0.0.40
codegen_flags: <defaults>
</compile_context>

<pallas_src>
import math

import jax
import jax.numpy as jnp
from jax.experimental import pallas as pl
from jax.experimental.pallas import tpu as pltpu


def _round_up(v: int, m: int) -> int:
    return (v + m - 1) // m * m


# ---------------------------------------------------------------------------
# Fused kernel: out = tanh(A @ (X @ W) + bias), tiled reduction over neighbors.
#   flags_ref: (ni*nk,) i32 SMEM   — nonzero flag per (i,k) A block
#   a_ref: (TM, TK) bf16           — normalized adjacency block  A[i-tile, k-tile]
#   x_ref: (TK, CI) bf16           — node-feature block for the k-tile rows
#   w_ref: (CI, CO) bf16           — resident weight
#   b_ref: (1, CO)  f32            — resident bias
#   o_ref: (TM, CO) f32            — resident output tile (accumulator)
# ---------------------------------------------------------------------------
def _gcn_agg_kernel(flags_ref, a_ref, x_ref, w_ref, b_ref, o_ref):
    i = pl.program_id(0)
    k = pl.program_id(1)
    nk = pl.num_programs(1)

    @pl.when(k == 0)
    def _():
        # Initialize the resident output tile with the broadcast bias
        # (replaces a separate f32 scratch accumulator + finalize add).
        o_ref[...] = jnp.broadcast_to(b_ref[...], o_ref.shape)

    @pl.when(flags_ref[i * nk + k] > 0)
    def _():
        # Fused stage 1: xw_tile = X_tile @ W (recomputed per i; cost ~C_in/TM).
        xw = jnp.dot(
            x_ref[...], w_ref[...], preferred_element_type=jnp.float32
        ).astype(a_ref.dtype)
        # Stage 2: accumulate A_tile @ xw_tile directly into the f32 output.
        o_ref[...] += jnp.dot(
            a_ref[...], xw, preferred_element_type=jnp.float32
        )

    @pl.when(k == nk - 1)
    def _():
        # tanh (EUP) fused in the finalize branch.
        o_ref[...] = jnp.tanh(o_ref[...])


def gcn_forward(
    x,
    edge_index,
    edge_weight,
    weight,
    bias,
    *,
    improved=True,
    tm=512,                   # output-row tile (512 amortizes per-step overhead)
    tk=256,                   # reduction tile  (matches 256-wide v6e/v7x MXU;
                              #  use 128 on v5e if desired)
    mm_dtype=jnp.bfloat16,    # bf16 operands for all MXU work, f32 accumulation
):
    """x: [N, C_in] f32, edge_index: [2, E] i32, edge_weight: [E] f32,
    weight: [C_in, C_out] f32, bias: [C_out] f32 -> [N, C_out] f32."""
    n = x.shape[0]
    c_in = weight.shape[0]
    c_out = weight.shape[1]

    lane = 128
    n_pad = _round_up(n, math.lcm(tm, tk))
    ci_pad = _round_up(c_in, lane)
    co_pad = _round_up(c_out, lane)
    ni = n_pad // tm
    nk = n_pad // tk

    # --- glue: add self-loops (fill = 2.0 if improved else 1.0) -------------
    fill = 2.0 if improved else 1.0
    loop_idx = jnp.arange(n, dtype=edge_index.dtype)
    ei = jnp.concatenate([edge_index, jnp.stack([loop_idx, loop_idx])], axis=1)
    ew = jnp.concatenate(
        [edge_weight, jnp.full((n,), fill, dtype=edge_weight.dtype)]
    )
    row, col = ei[0], ei[1]

    # --- glue: symmetric normalization ---------------------------------------
    deg = jnp.zeros((n,), dtype=jnp.float32).at[col].add(ew)
    deg_inv_sqrt = jnp.where(deg > 0, jax.lax.rsqrt(deg), 0.0)
    norm = deg_inv_sqrt[row] * ew * deg_inv_sqrt[col]

    # --- glue: densified normalized adjacency at padded size (A[col,row]=norm)
    a_dense = (
        jnp.zeros((n_pad, n_pad), dtype=jnp.float32).at[col, row].add(norm)
    ).astype(mm_dtype)

    # --- glue: per-(i,k) nonzero-block flags for the pl.when skip path -------
    bi = (col // tm).astype(jnp.int32)
    bk = (row // tk).astype(jnp.int32)
    counts = jnp.zeros((ni * nk,), dtype=jnp.int32).at[bi * nk + bk].add(1)
    flags = (counts > 0).astype(jnp.int32)

    # --- zero-pad features / params to lane-dense shapes ---------------------
    x_pad = jnp.zeros((n_pad, ci_pad), mm_dtype).at[:n, :c_in].set(
        x.astype(mm_dtype)
    )
    w_pad = jnp.zeros((ci_pad, co_pad), mm_dtype).at[:c_in, :c_out].set(
        weight.astype(mm_dtype)
    )
    b_pad = jnp.zeros((1, co_pad), jnp.float32).at[0, :c_out].set(
        bias.astype(jnp.float32)
    )

    # --- fused Pallas call: out = tanh(A @ (X @ W) + b) ----------------------
    out = pl.pallas_call(
        _gcn_agg_kernel,
        out_shape=jax.ShapeDtypeStruct((n_pad, co_pad), jnp.float32),
        grid_spec=pltpu.PrefetchScalarGridSpec(
            num_scalar_prefetch=1,
            grid=(ni, nk),
            in_specs=[
                pl.BlockSpec((tm, tk), lambda i, k, f: (i, k)),        # A
                pl.BlockSpec((tk, ci_pad), lambda i, k, f: (k, 0)),    # X
                pl.BlockSpec((ci_pad, co_pad), lambda i, k, f: (0, 0)),  # W (resident)
                pl.BlockSpec((1, co_pad), lambda i, k, f: (0, 0)),     # bias (resident)
            ],
            out_specs=pl.BlockSpec((tm, co_pad), lambda i, k, f: (i, 0)),
        ),
        compiler_params=pltpu.CompilerParams(
            dimension_semantics=("parallel", "arbitrary"),
        ),
    )(flags, a_dense, x_pad, w_pad, b_pad)

    return out[:n, :c_out]


# ---------------------------------------------------------------------------
# Pure-JAX f32 reference for a quick self-check
# ---------------------------------------------------------------------------
def gcn_reference(x, edge_index, edge_weight, weight, bias, *, improved=True):
    n = x.shape[0]
    fill = 2.0 if improved else 1.0
    loop_idx = jnp.arange(n, dtype=edge_index.dtype)
    ei = jnp.concatenate([edge_index, jnp.stack([loop_idx, loop_idx])], axis=1)
    ew = jnp.concatenate(
        [edge_weight, jnp.full((n,), fill, dtype=edge_weight.dtype)]
    )
    row, col = ei[0], ei[1]
    deg = jnp.zeros((n,), dtype=jnp.float32).at[col].add(ew)
    dis = jnp.where(deg > 0, jax.lax.rsqrt(deg), 0.0)
    norm = dis[row] * ew * dis[col]
    xw = x @ weight
    out = jnp.zeros((n, weight.shape[1]), dtype=jnp.float32).at[col].add(
        norm[:, None] * xw[row]
    )
    return jnp.tanh(out + bias[None, :])


if __name__ == "__main__":
    # Small deterministic problem sized to exercise padding, a (2,4) grid, and
    # the empty-block skip path (padded k-tiles beyond node 699 are all-zero).
    N, C_IN, C_OUT, E = 700, 16, 64, 4096
    key = jax.random.PRNGKey(0)
    kx, ksrc, kdst, kew, kwt, kb = jax.random.split(key, 6)

    x = jax.random.normal(kx, (N, C_IN), dtype=jnp.float32)

    # Random directed edges with no self-loops (so the "improved" add-self-loops
    # path is exactly what supplies the diagonal).
    src = jax.random.randint(ksrc, (E,), 0, N, dtype=jnp.int32)
    dst = (src + 1 + jax.random.randint(kdst, (E,), 0, N - 1, dtype=jnp.int32)) % N
    edge_index = jnp.stack([src, dst]).astype(jnp.int32)
    edge_weight = jax.random.uniform(
        kew, (E,), dtype=jnp.float32, minval=0.5, maxval=1.5
    )

    # Deterministic parameter init (GCNConv: lin weight [C_in, C_out], bias).
    weight = jax.random.normal(kwt, (C_IN, C_OUT), dtype=jnp.float32) * (
        1.0 / jnp.sqrt(C_IN)
    )
    bias = jax.random.normal(kb, (C_OUT,), dtype=jnp.float32) * 0.1

    out = gcn_forward(x, edge_index, edge_weight, weight, bias, improved=True)
    out = jax.block_until_ready(out)

    ref = gcn_reference(x, edge_index, edge_weight, weight, bias, improved=True)
    assert out.shape == (N, C_OUT)
    # bf16 MXU operands (f32 accumulation) -> intentionally loose tolerance.
    max_err = float(jnp.max(jnp.abs(out - ref)))
    assert jnp.allclose(out, ref, atol=5e-2, rtol=0.0), max_err
    print("KERNEL_OK")
</pallas_src>

<mosaic_0001>
module attributes {stable_mosaic.version = 11 : i64} {
  func.func @_gcn_agg_kernel(%arg0: i32, %arg1: i32, %arg2: memref<8xi32, #tpu.memory_space<smem>>, %arg3: memref<512x256xbf16, #tpu.memory_space<vmem>>, %arg4: memref<256x128xbf16, #tpu.memory_space<vmem>>, %arg5: memref<128x128xbf16, #tpu.memory_space<vmem>>, %arg6: memref<1x128xf32, #tpu.memory_space<vmem>>, %arg7: memref<512x128xf32, #tpu.memory_space<vmem>>) attributes {dimension_semantics = [#tpu.dimension_semantics<parallel>, #tpu.dimension_semantics<arbitrary>], iteration_bounds = array<i64: 2, 4>, scalar_prefetch = 1 : i64, scratch_operands = 0 : i64, tpu.core_type = #tpu.core_type<tc>, window_params = [{transform_indices = @transform_0, window_bounds = array<i64: 512, 256>}, {transform_indices = @transform_1, window_bounds = array<i64: 256, 128>}, {pipeline_mode = #tpu.pipeline_mode<synchronous>, transform_indices = @transform_2, window_bounds = array<i64: 128, 128>}, {pipeline_mode = #tpu.pipeline_mode<synchronous>, transform_indices = @transform_3, window_bounds = array<i64: 1, 128>}, {transform_indices = @transform_4, window_bounds = array<i64: 512, 128>}]} {
    %c0_i32 = arith.constant 0 : i32
    %0 = arith.cmpi eq, %arg1, %c0_i32 : i32
    %1 = arith.extui %0 : i1 to i32
    %c0_i32_0 = arith.constant 0 : i32
    %2 = arith.cmpi ne, %1, %c0_i32_0 : i32
    scf.if %2 {
      %c0 = arith.constant 0 : index
      %c0_4 = arith.constant 0 : index
      %13 = vector.load %arg6[%c0, %c0_4] : memref<1x128xf32, #tpu.memory_space<vmem>>, vector<1x128xf32>
      %14 = vector.shape_cast %13 : vector<1x128xf32> to vector<1x128xf32>
      %15 = vector.broadcast %14 : vector<1x128xf32> to vector<512x128xf32>
      %c0_5 = arith.constant 0 : index
      %c0_6 = arith.constant 0 : index
      %16 = vector.load %arg7[%c0_5, %c0_6] : memref<512x128xf32, #tpu.memory_space<vmem>>, vector<512x128xf32>
      tpu.vector_store %arg7[%c0_5, %c0_6], %15 {strides = array<i32>} : memref<512x128xf32, #tpu.memory_space<vmem>>, vector<512x128xf32>,
    } else {
    }
    %c4_i32 = arith.constant 4 : i32
    %3 = arith.muli %arg0, %c4_i32 : i32
    %4 = arith.addi %3, %arg1 : i32
    %5 = arith.index_cast %4 : i32 to index
    %6 = memref.load %arg2[%5] : memref<8xi32, #tpu.memory_space<smem>>
    %c0_i32_1 = arith.constant 0 : i32
    %7 = arith.cmpi sgt, %6, %c0_i32_1 : i32
    %8 = arith.extui %7 : i1 to i32
    %c0_i32_2 = arith.constant 0 : i32
    %9 = arith.cmpi ne, %8, %c0_i32_2 : i32
    scf.if %9 {
      %c0 = arith.constant 0 : index
      %c0_4 = arith.constant 0 : index
      %13 = vector.load %arg4[%c0, %c0_4] : memref<256x128xbf16, #tpu.memory_space<vmem>>, vector<256x128xbf16>
      %c0_5 = arith.constant 0 : index
      %c0_6 = arith.constant 0 : index
      %14 = vector.load %arg5[%c0_5, %c0_6] : memref<128x128xbf16, #tpu.memory_space<vmem>>, vector<128x128xbf16>
      %cst = arith.constant dense<0.000000e+00> : vector<256x128xf32>
      %15 = tpu.matmul %13, %14, %cst {dimension_numbers = #tpu.dot_dimension_numbers<[1], [0], [0], [1], [0, 0, 1, 1], [], []>} : vector<256x128xbf16>, vector<128x128xbf16>, vector<256x128xf32> -> vector<256x128xf32>
      %16 = arith.truncf %15 : vector<256x128xf32> to vector<256x128xbf16>
      %c0_7 = arith.constant 0 : index
      %c0_8 = arith.constant 0 : index
      %17 = vector.load %arg7[%c0_7, %c0_8] : memref<512x128xf32, #tpu.memory_space<vmem>>, vector<512x128xf32>
      %c0_9 = arith.constant 0 : index
      %c0_10 = arith.constant 0 : index
      %18 = vector.load %arg3[%c0_9, %c0_10] : memref<512x256xbf16, #tpu.memory_space<vmem>>, vector<512x256xbf16>
      %cst_11 = arith.constant dense<0.000000e+00> : vector<512x128xf32>
      %19 = tpu.matmul %18, %16, %cst_11 {dimension_numbers = #tpu.dot_dimension_numbers<[1], [0], [0], [1], [0, 0, 1, 1], [], []>} : vector<512x256xbf16>, vector<256x128xbf16>, vector<512x128xf32> -> vector<512x128xf32>
      %20 = arith.addf %17, %19 : vector<512x128xf32>
      %c0_12 = arith.constant 0 : index
      %c0_13 = arith.constant 0 : index
      %21 = vector.load %arg7[%c0_12, %c0_13] : memref<512x128xf32, #tpu.memory_space<vmem>>, vector<512x128xf32>
      tpu.vector_store %arg7[%c0_12, %c0_13], %20 {strides = array<i32>} : memref<512x128xf32, #tpu.memory_space<vmem>>, vector<512x128xf32>,
    } else {
    }
    %c3_i32 = arith.constant 3 : i32
    %10 = arith.cmpi eq, %arg1, %c3_i32 : i32
    %11 = arith.extui %10 : i1 to i32
    %c0_i32_3 = arith.constant 0 : i32
    %12 = arith.cmpi ne, %11, %c0_i32_3 : i32
    scf.if %12 {
      %c0 = arith.constant 0 : index
      %c0_4 = arith.constant 0 : index
      %13 = vector.load %arg7[%c0, %c0_4] : memref<512x128xf32, #tpu.memory_space<vmem>>, vector<512x128xf32>
      %14 = math.tanh %13 : vector<512x128xf32>
      %c0_5 = arith.constant 0 : index
      %c0_6 = arith.constant 0 : index
      %15 = vector.load %arg7[%c0_5, %c0_6] : memref<512x128xf32, #tpu.memory_space<vmem>>, vector<512x128xf32>
      tpu.vector_store %arg7[%c0_5, %c0_6], %14 {strides = array<i32>} : memref<512x128xf32, #tpu.memory_space<vmem>>, vector<512x128xf32>,
    } else {
    }
    return
  }
  func.func @transform_0(%arg0: i32, %arg1: i32, %arg2: memref<8xi32, #tpu.memory_space<smem>>) -> (i32, i32) {
    %c0_i32 = arith.constant 0 : i32
    return %arg0, %arg1 : i32, i32
  }
  func.func @transform_1(%arg0: i32, %arg1: i32, %arg2: memref<8xi32, #tpu.memory_space<smem>>) -> (i32, i32) {
    %c0_i32 = arith.constant 0 : i32
    %c0_i32_0 = arith.constant 0 : i32
    return %arg1, %c0_i32 : i32, i32
  }
  func.func @transform_2(%arg0: i32, %arg1: i32, %arg2: memref<8xi32, #tpu.memory_space<smem>>) -> (i32, i32) {
    %c0_i32 = arith.constant 0 : i32
    %c0_i32_0 = arith.constant 0 : i32
    %c0_i32_1 = arith.constant 0 : i32
    return %c0_i32, %c0_i32_0 : i32, i32
  }
  func.func @transform_3(%arg0: i32, %arg1: i32, %arg2: memref<8xi32, #tpu.memory_space<smem>>) -> (i32, i32) {
    %c0_i32 = arith.constant 0 : i32
    %c0_i32_0 = arith.constant 0 : i32
    %c0_i32_1 = arith.constant 0 : i32
    return %c0_i32, %c0_i32_0 : i32, i32
  }
  func.func @transform_4(%arg0: i32, %arg1: i32, %arg2: memref<8xi32, #tpu.memory_space<smem>>) -> (i32, i32) {
    %c0_i32 = arith.constant 0 : i32
    %c0_i32_0 = arith.constant 0 : i32
    return %arg0, %c0_i32 : i32, i32
  }
}

</mosaic_0001>

<llo_original>
// kernel: tpu_custom_call.1
$region0: #{tpu_custom_call.1}
  #allocation0 [shape = 'u32[]', space=smem, size = 0x4, offset = 0x4, fixed_abs, tag = 'smem constant byte address 0x4 - core index']
  #allocation1 [shape = 'u32[144,128]{1,0:T(1,128)}', space=vmem, size = 0x12000, scoped, tag = 'internal scratch']
  #allocation2 [shape = 's32[1]{0}', space=sflag, size = 0x4, scoped, tag = 'scoped memory for tpu_custom_call.1']
  #allocation3 [shape = 'u8[512]{0}', space=smem, size = 0x200, scoped, tag = 'prefetched SMEM operand 0']
  %s0 = inlined_call_operand.hbm [shape: s32[8], index: 0, kind: input, shape index: {}]
  %s1 = inlined_call_operand.hbm [shape: bf16[1024,1024], index: 1, kind: input, shape index: {}]
  %s2 = inlined_call_operand.hbm [shape: bf16[1024,128], index: 2, kind: input, shape index: {}]
  %s3 = inlined_call_operand.hbm [shape: bf16[128,128], index: 3, kind: input, shape index: {}]
  %s4 = inlined_call_operand.hbm [shape: f32[1,128], index: 4, kind: input, shape index: {}]
  %s5 = inlined_call_operand.hbm [shape: f32[1024,128], index: 5, kind: output, shape index: {}]
  %s6 = sld [smem:[#allocation0]]
  $region77: #{tpu_custom_call.1} parent=0
    _
  %s8 = ssub.s32 1, %s6
  %s9 = scalar_select 0, %s8, %s6
  %11 = dma.hbm_to_smem %s0, 16, [#allocation3], [#allocation2]
  %12 = dma.done [#allocation2], 16
  %13 = sfence
  $region1: #{tpu_custom_call.1} parent=0
    #allocation4 [shape = 'u8[524288]{0}', space=vmem, size = 0x80000, scoped, tag = 'input window, operand 1']
    #allocation5 [shape = 's32[2]{0}', space=sflag, size = 0x8, scoped, tag = 'scoped memory for tpu_custom_call.1']
    #allocation6 [shape = 's32[2]{0}', space=sflag, size = 0x8, scoped, tag = 'scoped memory for tpu_custom_call.1']
    #allocation7 [shape = 'u8[131072]{0}', space=vmem, size = 0x20000, scoped, tag = 'input window, operand 2']
    #allocation8 [shape = 's32[2]{0}', space=sflag, size = 0x8, scoped, tag = 'scoped memory for tpu_custom_call.1']
    #allocation9 [shape = 'u8[32768]{0}', space=vmem, size = 0x8000, scoped, tag = 'input window, operand 3, single buffered']
    #allocation10 [shape = 'u8[512]{0}', space=vmem, size = 0x400, scoped, tag = 'input window, operand 4, single buffered']
    #allocation11 [shape = 's32[1]{0}', space=sflag, size = 0x4, scoped, tag = 'scoped memory for tpu_custom_call.1']
    #allocation12 [shape = 'u8[524288]{0}', space=vmem, size = 0x80000, scoped, tag = 'output window, operand 0']
    %14 = vsyncpa [#allocation5], 0
    %s15 = scalar_lea.sflag [#allocation5], 1
    %16 = vsyncpa %s15, 0
    %17 = vsyncpa [#allocation8], 0
    %s18 = scalar_lea.sflag [#allocation8], 1
    %19 = vsyncpa %s18, 0
    %20 = vsyncpa [#allocation11], 0
    %21 = vsyncpa [#allocation6], 0
    %s22 = scalar_lea.sflag [#allocation6], 1
    %23 = vsyncpa %s22, 0
    loop: start=0, step=1, limit=10
    $region2: #{tpu_custom_call.1} parent=1 // loop_pre_header
      _
    $region3: #{tpu_custom_call.1} parent=1 // loop_header
      %s25 = sphi 0, %s29
      %p26 = scmp.ge.s32.totalorder %s25, 10
      %s32 = sphi 0, %s44
      %s33 = sphi 0, %s40
      %s34 = sphi 0, %s32
      %s35 = sphi 0, %s33
      %s36 = sphi 0, %s34
      %s37 = sphi 0, %s35
      %s49 = sphi 0, %s51
      %s52 = sphi 0, %s49
      %s53 = sphi 0, %s52
      %s69 = sphi 0, %s53
      %s75 = sphi 0, %s77
      %s78 = sphi 0, %s75
      %s79 = sphi 0, %s78
      %s95 = sphi 0, %s79
      %s99 = sphi 0, %s99
      %s101 = sphi 0, %s99
      %s102 = sphi 0, %s101
      %s116 = sphi 0, %s102
      %s120 = sphi 0, %s120
      %s122 = sphi 0, %s120
      %s123 = sphi 0, %s122
      %s137 = sphi 0, %s123
      %s143 = sphi 0, %s145
      %s146 = sphi 0, %s143
      %s147 = sphi 0, %s146
      %s163 = sphi 0, %s147
    $region4: #{tpu_custom_call.1} parent=1 // loop_header_branch
      %28 = sbr.rel (%p26) target = $region8
    $region5: #{tpu_custom_call.1} parent=1 // loop_body
      %s30 = ssub.s32 %s25, 1
      %s31 = ssub.s32 %s25, 2
      %s38 = sadd.s32 1, %s33
      %p39 = scmp.ge.s32.totalorder %s38, 4
      %s40 = scalar_select %p39, 0, %s38
      %s41 = sadd.s32 1, %s32
      %s42 = scalar_select %p39, %s41, %s32
      %p43 = scmp.ge.s32.totalorder %s42, 2
      %s44 = scalar_select %p43, 0, %s42
      %s45 = ssub.s32 %s32, %s44
      %s46 = ssub.s32 %s33, %s40
      %s47 = sor.u32 %s45, %s46
      %p48 = scmp.eq.s32.totalorder %s47, 0
      %s50 = sadd.s32 %s49, 1
      %s51 = scalar_select %p48, %s49, %s50
      %p54 = pneg %p48
      %p55 = scmp.eq.s32.totalorder %s25, 7
      %p56 = por %p54, %p55
      %p57 = scmp.ne.s32.totalorder %s49, %s52
      %p58 = scmp.eq.s32.totalorder %s25, 0
      %p59 = por %p57, %p58
      %p60 = scmp.ne.s32.totalorder %s49, %s52
      %p61 = scmp.eq.s32.totalorder %s30, 7
      %p62 = por %p60, %p61
      %p63 = scmp.ne.s32.totalorder %s52, %s53
      %p64 = scmp.eq.s32.totalorder %s30, 0
      %p65 = por %p63, %p64
      %p66 = scmp.ne.s32.totalorder %s52, %s53
      %p67 = scmp.eq.s32.totalorder %s31, 7
      %p68 = por %p66, %p67
      %p70 = scmp.ne.s32.totalorder %s53, %s69
      %p71 = scmp.eq.s32.totalorder %s31, 0
      %p72 = por %p70, %p71
      %s73 = ssub.s32 %s33, %s40
      %p74 = scmp.eq.s32.totalorder %s73, 0
      %s76 = sadd.s32 %s75, 1
      %s77 = scalar_select %p74, %s75, %s76
      %p80 = pneg %p74
      %p81 = scmp.eq.s32.totalorder %s25, 7
      %p82 = por %p80, %p81
      %p83 = scmp.ne.s32.totalorder %s75, %s78
      %p84 = scmp.eq.s32.totalorder %s25, 0
      %p85 = por %p83, %p84
      %p86 = scmp.ne.s32.totalorder %s75, %s78
      %p87 = scmp.eq.s32.totalorder %s30, 7
      %p88 = por %p86, %p87
      %p89 = scmp.ne.s32.totalorder %s78, %s79
      %p90 = scmp.eq.s32.totalorder %s30, 0
      %p91 = por %p89, %p90
      %p92 = scmp.ne.s32.totalorder %s78, %s79
      %p93 = scmp.eq.s32.totalorder %s31, 7
      %p94 = por %p92, %p93
      %p96 = scmp.ne.s32.totalorder %s79, %s95
      %p97 = scmp.eq.s32.totalorder %s31, 0
      %p98 = por %p96, %p97
      %s100 = sadd.s32 %s99, 1
      %p103 = scmp.eq.s32.totalorder %s25, 7
      %p104 = scmp.ne.s32.totalorder %s99, %s101
      %p105 = scmp.eq.s32.totalorder %s25, 0
      %p106 = por %p104, %p105
      %p107 = scmp.ne.s32.totalorder %s99, %s101
      %p108 = scmp.eq.s32.totalorder %s30, 7
      %p109 = por %p107, %p108
      %p110 = scmp.ne.s32.totalorder %s101, %s102
      %p111 = scmp.eq.s32.totalorder %s30, 0
      %p112 = por %p110, %p111
      %p113 = scmp.ne.s32.totalorder %s101, %s102
      %p114 = scmp.eq.s32.totalorder %s31, 7
      %p115 = por %p113, %p114
      %p117 = scmp.ne.s32.totalorder %s102, %s116
      %p118 = scmp.eq.s32.totalorder %s31, 0
      %p119 = por %p117, %p118
      %s121 = sadd.s32 %s120, 1
      %p124 = scmp.eq.s32.totalorder %s25, 7
      %p125 = scmp.ne.s32.totalorder %s120, %s122
      %p126 = scmp.eq.s32.totalorder %s25, 0
      %p127 = por %p125, %p126
      %p128 = scmp.ne.s32.totalorder %s120, %s122
      %p129 = scmp.eq.s32.totalorder %s30, 7
      %p130 = por %p128, %p129
      %p131 = scmp.ne.s32.totalorder %s122, %s123
      %p132 = scmp.eq.s32.totalorder %s30, 0
      %p133 = por %p131, %p132
      %p134 = scmp.ne.s32.totalorder %s122, %s123
      %p135 = scmp.eq.s32.totalorder %s31, 7
      %p136 = por %p134, %p135
      %p138 = scmp.ne.s32.totalorder %s123, %s137
      %p139 = scmp.eq.s32.totalorder %s31, 0
      %p140 = por %p138, %p139
      %s141 = ssub.s32 %s32, %s44
      %p142 = scmp.eq.s32.totalorder %s141, 0
      %s144 = sadd.s32 %s143, 1
      %s145 = scalar_select %p142, %s143, %s144
      %p148 = pneg %p142
      %p149 = scmp.eq.s32.totalorder %s25, 7
      %p150 = por %p148, %p149
      %p151 = scmp.ne.s32.totalorder %s143, %s146
      %p152 = scmp.eq.s32.totalorder %s25, 0
      %p153 = por %p151, %p152
      %p154 = scmp.ne.s32.totalorder %s143, %s146
      %p155 = scmp.eq.s32.totalorder %s30, 7
      %p156 = por %p154, %p155
      %p157 = scmp.ne.s32.totalorder %s146, %s147
      %p158 = scmp.eq.s32.totalorder %s30, 0
      %p159 = por %p157, %p158
      %p160 = scmp.ne.s32.totalorder %s146, %s147
      %p161 = scmp.eq.s32.totalorder %s31, 7
      %p162 = por %p160, %p161
      %p164 = scmp.ne.s32.totalorder %s147, %s163
      %p165 = scmp.eq.s32.totalorder %s31, 0
      %p166 = por %p164, %p165
      %p167 = scmp.le.s32.totalorder 1, %s25
      %p168 = scmp.lt.s32.totalorder %s25, 9
      %p169 = pnand %p167, %p168
      %p170 = pneg %p169
      // Predicated region
      $region9: #{tpu_custom_call.1} parent=5 // pred_check
        _
      $region10: #{tpu_custom_call.1} parent=5 // pred_check_branch
        %172 = sbr.rel (%p169) target = $region12
      $region11: #{tpu_custom_call.1} parent=5 // pred_region
        %s173 = ssub.s32 %s25, 1
        // Predicated region
        $region13: #{tpu_custom_call.1} parent=11 // pred_check
          %p174 = pneg %p112
        $region14: #{tpu_custom_call.1} parent=11 // pred_check_branch
          %176 = sbr.rel (%p174) target = $region16
        $region15: #{tpu_custom_call.1} parent=11 // pred_region
          %s178 = ssub.s32 1024, 1024
          %179 = vsyncadd [#allocation8], %s178
          %s180 = sshll.u32 [#allocation9], 4
          %s181 = int_to_ptr.vmem [resolvable:$true] %s180
          %186 = dma.hbm_to_vmem [thread:$0]  %s3, 1024, %s181, [#allocation8], 64, 64, 4
        $region16: #{tpu_custom_call.1} parent=11 // pred_fallthru
          _
        // Predicated region
        $region17: #{tpu_custom_call.1} parent=11 // pred_check
          %p187 = pneg %p133
        $region18: #{tpu_custom_call.1} parent=11 // pred_check_branch
          %189 = sbr.rel (%p187) target = $region20
        $region19: #{tpu_custom_call.1} parent=11 // pred_region
          %s191 = ssub.s32 16, 16
          %192 = vsyncadd [#allocation11], %s191
          %s194 = sshll.u32 [#allocation10], 4
          %s195 = int_to_ptr.vmem [resolvable:$true] %s194
          %197 = dma.hbm_to_vmem [thread:$0]  %s4, 16, %s195, [#allocation11]
        $region20: #{tpu_custom_call.1} parent=11 // pred_fallthru
          _
      $region12: #{tpu_custom_call.1} parent=5 // pred_fallthru
        _
      %p198 = scmp.lt.s32.totalorder %s25, 8
      // Predicated region
      $region21: #{tpu_custom_call.1} parent=5 // pred_check
        %p199 = pneg %p198
      $region22: #{tpu_custom_call.1} parent=5 // pred_check_branch
        %201 = sbr.rel (%p199) target = $region24
      $region23: #{tpu_custom_call.1} parent=5 // pred_region
        // Predicated region
        $region25: #{tpu_custom_call.1} parent=23 // pred_check
          %p202 = pneg %p59
        $region26: #{tpu_custom_call.1} parent=23 // pred_check_branch
          %204 = sbr.rel (%p202) target = $region28
        $region27: #{tpu_custom_call.1} parent=23 // pred_region
          %s205 = sand.u32 %s49, 1
          %s206 = scalar_lea.sflag [#allocation5], %s205
          %s207 = sand.u32 %s49, 1
          %s208 = smul.addr %s207, 512
          %s209 = scalar_lea.vmem [#allocation4], %s208
          %s210 = smul.u32 64, %s32
          %s211 = smul.u32 2, %s33
          %s213 = ssub.s32 8192, 8192
          %214 = vsyncadd %s206, %s213
          %s215 = smul.addr %s210, 8
          %s216 = sadd.s32 %s211, %s215
          %s217 = smul.addr %s216, 64
          %s218 = scalar_lea.hbm %s1, %s217
          %s219 = sshll.u32 %s209, 4
          %s220 = int_to_ptr.vmem [resolvable:$true] %s219
          %225 = dma.hbm_to_vmem [thread:$0]  %s218, 8192, %s220, %s206, 512, 128, 8
        $region28: #{tpu_custom_call.1} parent=23 // pred_fallthru
          _
        // Predicated region
        $region29: #{tpu_custom_call.1} parent=23 // pred_check
          %p226 = pneg %p85
        $region30: #{tpu_custom_call.1} parent=23 // pred_check_branch
          %228 = sbr.rel (%p226) target = $region32
        $region31: #{tpu_custom_call.1} parent=23 // pred_region
          %s229 = sand.u32 %s25, 1
          %s230 = scalar_lea.sflag [#allocation8], %s229
          %s231 = sand.u32 %s75, 1
          %s232 = smul.addr %s231, 128
          %s233 = scalar_lea.vmem [#allocation7], %s232
          %s234 = smul.u32 32, %s33
          %s236 = ssub.s32 2048, 2048
          %237 = vsyncadd %s230, %s236
          %s238 = smul.addr %s234, 64
          %s239 = scalar_lea.hbm %s2, %s238
          %s240 = sshll.u32 %s233, 4
          %s241 = int_to_ptr.vmem [resolvable:$true] %s240
          %246 = dma.hbm_to_vmem [thread:$0]  %s239, 2048, %s241, %s230, 64, 64, 4
        $region32: #{tpu_custom_call.1} parent=23 // pred_fallthru
          _
      $region24: #{tpu_custom_call.1} parent=5 // pred_fallthru
        _
      %p247 = scmp.le.s32.totalorder 1, %s25
      %p248 = scmp.lt.s32.totalorder %s25, 9
      %p249 = pnand %p247, %p248
      %p250 = pneg %p249
      // Predicated region
      $region33: #{tpu_custom_call.1} parent=5 // pred_check
        _
      $region34: #{tpu_custom_call.1} parent=5 // pred_check_branch
        %252 = sbr.rel (%p249) target = $region36
      $region35: #{tpu_custom_call.1} parent=5 // pred_region
        %s253 = ssub.s32 %s25, 1
        %s254 = sand.u32 %s52, 1
        %s255 = scalar_lea.sflag [#allocation5], %s254
        %s256 = sand.u32 %s52, 1
        %s257 = smul.addr %s256, 512
        %s258 = scalar_lea.vmem [#allocation4], %s257
        // Predicated region
        $region37: #{tpu_custom_call.1} parent=35 // pred_check
          %p259 = pneg %p65
        $region38: #{tpu_custom_call.1} parent=35 // pred_check_branch
          %261 = sbr.rel (%p259) target = $region40
        $region39: #{tpu_custom_call.1} parent=35 // pred_region
          %262 = dma.done %s255, 8192
        $region40: #{tpu_custom_call.1} parent=35 // pred_fallthru
          _
        %s263 = sand.u32 %s30, 1
        %s264 = scalar_lea.sflag [#allocation8], %s263
        %s265 = sand.u32 %s78, 1
        %s266 = smul.addr %s265, 128
        %s267 = scalar_lea.vmem [#allocation7], %s266
        // Predicated region
        $region41: #{tpu_custom_call.1} parent=35 // pred_check
          %p268 = pneg %p91
        $region42: #{tpu_custom_call.1} parent=35 // pred_check_branch
          %270 = sbr.rel (%p268) target = $region44
        $region43: #{tpu_custom_call.1} parent=35 // pred_region
          %271 = dma.done %s264, 2048
        $region44: #{tpu_custom_call.1} parent=35 // pred_fallthru
          _
        // Predicated region
        $region45: #{tpu_custom_call.1} parent=35 // pred_check
          %p272 = pneg %p112
        $region46: #{tpu_custom_call.1} parent=35 // pred_check_branch
          %274 = sbr.rel (%p272) target = $region48
        $region47: #{tpu_custom_call.1} parent=35 // pred_region
          %275 = dma.done [#allocation8], 1024
        $region48: #{tpu_custom_call.1} parent=35 // pred_fallthru
          _
        // Predicated region
        $region49: #{tpu_custom_call.1} parent=35 // pred_check
          %p276 = pneg %p133
        $region50: #{tpu_custom_call.1} parent=35 // pred_check_branch
          %278 = sbr.rel (%p276) target = $region52
        $region51: #{tpu_custom_call.1} parent=35 // pred_region
          %279 = dma.done [#allocation11], 16
        $region52: #{tpu_custom_call.1} parent=35 // pred_fallthru
          _
        %s280 = sand.u32 %s52, 1
        %s281 = scalar_lea.sflag [#allocation5], %s280
        %s282 = sand.u32 %s52, 1
        %s283 = smul.addr %s282, 512
        %s284 = scalar_lea.vmem [#allocation4], %s283
        %p285 = pneg %p65
        %p286 = pneg %p62
        %s287 = sand.u32 %s30, 1
        %s288 = scalar_lea.sflag [#allocation8], %s287
        %s289 = sand.u32 %s78, 1
        %s290 = smul.addr %s289, 128
        %s291 = scalar_lea.vmem [#allocation7], %s290
        %p292 = pneg %p91
        %p293 = pneg %p88
        %p294 = pneg %p112
        %p295 = pneg %p109
        %p296 = pneg %p133
        %p297 = pneg %p130
        %p298 = pneg %p159
        %p299 = pneg %p156
        %s300 = sand.u32 %s146, 1
        %s301 = scalar_lea.sflag [#allocation6], %s300
        %s302 = sand.u32 %s146, 1
        %s303 = smul.addr %s302, 512
        %s304 = scalar_lea.vmem [#allocation12], %s303
        %s305 = smul.u32 64, %s34
        %s306 = smul.u32 2, %s35
        %s307 = smul.u32 32, %s35
        %s308 = smul.u32 64, %s34
        %p310 = scmp.eq.s32.totalorder %s35, 0
        // Predicated region
        $region53: #{tpu_custom_call.1} parent=35 // pred_check
          %p311 = pneg %p310
        $region54: #{tpu_custom_call.1} parent=35 // pred_check_branch
          %313 = sbr.rel (%p311) target = $region56
        $region55: #{tpu_custom_call.1} parent=35 // pred_region
          %v314 = vld [vmem:[#allocation10] sm:$0x1]
          %v316 = vlaneseq
          %v317 = vshrl.u32 %v316, 7
          %v318 = vsub.s32 0, %v317
          %v319 = vrot.slane %v314, %v318
          %321 = vst [vmem:[%s304] sm:$0xff] %v319
          %322 = vst [vmem:[%s304 + $0x8] sm:$0xff] %v319
          %323 = vst [vmem:[%s304 + $0x10] sm:$0xff] %v319
          %324 = vst [vmem:[%s304 + $0x18] sm:$0xff] %v319
          %325 = vst [vmem:[%s304 + $0x20] sm:$0xff] %v319
          %326 = vst [vmem:[%s304 + $0x28] sm:$0xff] %v319
          %327 = vst [vmem:[%s304 + $0x30] sm:$0xff] %v319
          %328 = vst [vmem:[%s304 + $0x38] sm:$0xff] %v319
          %329 = vst [vmem:[%s304 + $0x40] sm:$0xff] %v319
          %330 = vst [vmem:[%s304 + $0x48] sm:$0xff] %v319
          %331 = vst [vmem:[%s304 + $0x50] sm:$0xff] %v319
          %332 = vst [vmem:[%s304 + $0x58] sm:$0xff] %v319
          %333 = vst [vmem:[%s304 + $0x60] sm:$0xff] %v319
          %334 = vst [vmem:[%s304 + $0x68] sm:$0xff] %v319
          %335 = vst [vmem:[%s304 + $0x70] sm:$0xff] %v319
          %336 = vst [vmem:[%s304 + $0x78] sm:$0xff] %v319
          %337 = vst [vmem:[%s304 + $0x80] sm:$0xff] %v319
          %338 = vst [vmem:[%s304 + $0x88] sm:$0xff] %v319
          %339 = vst [vmem:[%s304 + $0x90] sm:$0xff] %v319
          %340 = vst [vmem:[%s304 + $0x98] sm:$0xff] %v319
          %341 = vst [vmem:[%s304 + $0xa0] sm:$0xff] %v319
          %342 = vst [vmem:[%s304 + $0xa8] sm:$0xff] %v319
          %343 = vst [vmem:[%s304 + $0xb0] sm:$0xff] %v319
          %344 = vst [vmem:[%s304 + $0xb8] sm:$0xff] %v319
          %345 = vst [vmem:[%s304 + $0xc0] sm:$0xff] %v319
          %346 = vst [vmem:[%s304 + $0xc8] sm:$0xff] %v319
          %347 = vst [vmem:[%s304 + $0xd0] sm:$0xff] %v319
          %348 = vst [vmem:[%s304 + $0xd8] sm:$0xff] %v319
          %349 = vst [vmem:[%s304 + $0xe0] sm:$0xff] %v319
          %350 = vst [vmem:[%s304 + $0xe8] sm:$0xff] %v319
          %351 = vst [vmem:[%s304 + $0xf0] sm:$0xff] %v319
          %352 = vst [vmem:[%s304 + $0xf8] sm:$0xff] %v319
          %353 = vst [vmem:[%s304 + $0x100] sm:$0xff] %v319
          %354 = vst [vmem:[%s304 + $0x108] sm:$0xff] %v319
          %355 = vst [vmem:[%s304 + $0x110] sm:$0xff] %v319
          %356 = vst [vmem:[%s304 + $0x118] sm:$0xff] %v319
          %357 = vst [vmem:[%s304 + $0x120] sm:$0xff] %v319
          %358 = vst [vmem:[%s304 + $0x128] sm:$0xff] %v319
          %359 = vst [vmem:[%s304 + $0x130] sm:$0xff] %v319
          %360 = vst [vmem:[%s304 + $0x138] sm:$0xff] %v319
          %361 = vst [vmem:[%s304 + $0x140] sm:$0xff] %v319
          %362 = vst [vmem:[%s304 + $0x148] sm:$0xff] %v319
          %363 = vst [vmem:[%s304 + $0x150] sm:$0xff] %v319
          %364 = vst [vmem:[%s304 + $0x158] sm:$0xff] %v319
          %365 = vst [vmem:[%s304 + $0x160] sm:$0xff] %v319
          %366 = vst [vmem:[%s304 + $0x168] sm:$0xff] %v319
          %367 = vst [vmem:[%s304 + $0x170] sm:$0xff] %v319
          %368 = vst [vmem:[%s304 + $0x178] sm:$0xff] %v319
          %369 = vst [vmem:[%s304 + $0x180] sm:$0xff] %v319
          %370 = vst [vmem:[%s304 + $0x188] sm:$0xff] %v319
          %371 = vst [vmem:[%s304 + $0x190] sm:$0xff] %v319
          %372 = vst [vmem:[%s304 + $0x198] sm:$0xff] %v319
          %373 = vst [vmem:[%s304 + $0x1a0] sm:$0xff] %v319
          %374 = vst [vmem:[%s304 + $0x1a8] sm:$0xff] %v319
          %375 = vst [vmem:[%s304 + $0x1b0] sm:$0xff] %v319
          %376 = vst [vmem:[%s304 + $0x1b8] sm:$0xff] %v319
          %377 = vst [vmem:[%s304 + $0x1c0] sm:$0xff] %v319
          %378 = vst [vmem:[%s304 + $0x1c8] sm:$0xff] %v319
          %379 = vst [vmem:[%s304 + $0x1d0] sm:$0xff] %v319
          %380 = vst [vmem:[%s304 + $0x1d8] sm:$0xff] %v319
          %381 = vst [vmem:[%s304 + $0x1e0] sm:$0xff] %v319
          %382 = vst [vmem:[%s304 + $0x1e8] sm:$0xff] %v319
          %383 = vst [vmem:[%s304 + $0x1f0] sm:$0xff] %v319
          %384 = vst [vmem:[%s304 + $0x1f8] sm:$0xff] %v319
        $region56: #{tpu_custom_call.1} parent=35 // pred_fallthru
          _
        %s385 = smul.u32 %s34, 4
        %s386 = sadd.s32 %s385, %s35
        %s387 = sld [smem:[#allocation3 + %s386]]
        %p388 = scmp.gt.s32.totalorder %s387, 0
        // Predicated region
        $region57: #{tpu_custom_call.1} parent=35 // pred_check
          %p389 = pneg %p388
        $region58: #{tpu_custom_call.1} parent=35 // pred_check_branch
          %391 = sbr.rel (%p389) target = $region60
        $region59: #{tpu_custom_call.1} parent=35 // pred_region
          %v392 = vld [vmem:[%s267] sm:$0xf]
          %v393 = vld [vmem:[%s267 + $0x4] sm:$0xf]
          %v394 = vld [vmem:[%s267 + $0x8] sm:$0xf]
          %v395 = vld [vmem:[%s267 + $0xc] sm:$0xf]
          %v396 = vld [vmem:[%s267 + $0x10] sm:$0xf]
          %v397 = vld [vmem:[%s267 + $0x14] sm:$0xf]
          %v398 = vld [vmem:[%s267 + $0x18] sm:$0xf]
          %v399 = vld [vmem:[%s267 + $0x1c] sm:$0xf]
          %v400 = vld [vmem:[%s267 + $0x20] sm:$0xf]
          %v401 = vld [vmem:[%s267 + $0x24] sm:$0xf]
          %v402 = vld [vmem:[%s267 + $0x28] sm:$0xf]
          %v403 = vld [vmem:[%s267 + $0x2c] sm:$0xf]
          %v404 = vld [vmem:[%s267 + $0x30] sm:$0xf]
          %v405 = vld [vmem:[%s267 + $0x34] sm:$0xf]
          %v406 = vld [vmem:[%s267 + $0x38] sm:$0xf]
          %v407 = vld [vmem:[%s267 + $0x3c] sm:$0xf]
          %v408 = vld [vmem:[%s267 + $0x40] sm:$0xf]
          %v409 = vld [vmem:[%s267 + $0x44] sm:$0xf]
          %v410 = vld [vmem:[%s267 + $0x48] sm:$0xf]
          %v411 = vld [vmem:[%s267 + $0x4c] sm:$0xf]
          %v412 = vld [vmem:[%s267 + $0x50] sm:$0xf]
          %v413 = vld [vmem:[%s267 + $0x54] sm:$0xf]
          %v414 = vld [vmem:[%s267 + $0x58] sm:$0xf]
          %v415 = vld [vmem:[%s267 + $0x5c] sm:$0xf]
          %v416 = vld [vmem:[%s267 + $0x60] sm:$0xf]
          %v417 = vld [vmem:[%s267 + $0x64] sm:$0xf]
          %v418 = vld [vmem:[%s267 + $0x68] sm:$0xf]
          %v419 = vld [vmem:[%s267 + $0x6c] sm:$0xf]
          %v420 = vld [vmem:[%s267 + $0x70] sm:$0xf]
          %v421 = vld [vmem:[%s267 + $0x74] sm:$0xf]
          %v422 = vld [vmem:[%s267 + $0x78] sm:$0xf]
          %v423 = vld [vmem:[%s267 + $0x7c] sm:$0xf]
          %v424 = vld [vmem:[#allocation9] sm:$0xf]
          %v425 = vld [vmem:[#allocation9 + $0x4] sm:$0xf]
          %v426 = vld [vmem:[#allocation9 + $0x8] sm:$0xf]
          %v427 = vld [vmem:[#allocation9 + $0xc] sm:$0xf]
          %v428 = vld [vmem:[#allocation9 + $0x10] sm:$0xf]
          %v429 = vld [vmem:[#allocation9 + $0x14] sm:$0xf]
          %v430 = vld [vmem:[#allocation9 + $0x18] sm:$0xf]
          %v431 = vld [vmem:[#allocation9 + $0x1c] sm:$0xf]
          %v432 = vld [vmem:[#allocation9 + $0x20] sm:$0xf]
          %v433 = vld [vmem:[#allocation9 + $0x24] sm:$0xf]
          %v434 = vld [vmem:[#allocation9 + $0x28] sm:$0xf]
          %v435 = vld [vmem:[#allocation9 + $0x2c] sm:$0xf]
          %v436 = vld [vmem:[#allocation9 + $0x30] sm:$0xf]
          %v437 = vld [vmem:[#allocation9 + $0x34] sm:$0xf]
          %v438 = vld [vmem:[#allocation9 + $0x38] sm:$0xf]
          %v439 = vld [vmem:[#allocation9 + $0x3c] sm:$0xf]
          %v472 = vunpack.c.l.b16 %v392
          %v473 = vunpack.c.l.b16 %v393
          %v474 = vunpack.c.l.b16 %v394
          %v475 = vunpack.c.l.b16 %v395
          %v476 = vunpack.c.l.b16 %v396
          %v477 = vunpack.c.l.b16 %v397
          %v478 = vunpack.c.l.b16 %v398
          %v479 = vunpack.c.l.b16 %v399
          %v480 = vunpack.c.l.b16 %v400
          %v481 = vunpack.c.l.b16 %v401
          %v482 = vunpack.c.l.b16 %v402
          %v483 = vunpack.c.l.b16 %v403
          %v484 = vunpack.c.l.b16 %v404
          %v485 = vunpack.c.l.b16 %v405
          %v486 = vunpack.c.l.b16 %v406
          %v487 = vunpack.c.l.b16 %v407
          %v488 = vunpack.c.l.b16 %v408
          %v489 = vunpack.c.l.b16 %v409
          %v490 = vunpack.c.l.b16 %v410
          %v491 = vunpack.c.l.b16 %v411
          %v492 = vunpack.c.l.b16 %v412
          %v493 = vunpack.c.l.b16 %v413
          %v494 = vunpack.c.l.b16 %v414
          %v495 = vunpack.c.l.b16 %v415
          %v496 = vunpack.c.l.b16 %v416
          %v497 = vunpack.c.l.b16 %v417
          %v498 = vunpack.c.l.b16 %v418
          %v499 = vunpack.c.l.b16 %v419
          %v500 = vunpack.c.l.b16 %v420
          %v501 = vunpack.c.l.b16 %v421
          %v502 = vunpack.c.l.b16 %v422
          %v503 = vunpack.c.l.b16 %v423
          %v504 = vpack.c.b16 %v473, %v472
          %v505 = vpack.c.b16 %v475, %v474
          %v506 = vpack.c.b16 %v477, %v476
          %v507 = vpack.c.b16 %v479, %v478
          %v508 = vpack.c.b16 %v481, %v480
          %v509 = vpack.c.b16 %v483, %v482
          %v510 = vpack.c.b16 %v485, %v484
          %v511 = vpack.c.b16 %v487, %v486
          %v512 = vpack.c.b16 %v489, %v488
          %v513 = vpack.c.b16 %v491, %v490
          %v514 = vpack.c.b16 %v493, %v492
          %v515 = vpack.c.b16 %v495, %v494
          %v516 = vpack.c.b16 %v497, %v496
          %v517 = vpack.c.b16 %v499, %v498
          %v518 = vpack.c.b16 %v501, %v500
          %v519 = vpack.c.b16 %v503, %v502
          %v552 = vunpack.c.l.b16 %v424
          %v553 = vunpack.c.l.b16 %v425
          %v554 = vunpack.c.l.b16 %v426
          %v555 = vunpack.c.l.b16 %v427
          %v556 = vunpack.c.l.b16 %v428
          %v557 = vunpack.c.l.b16 %v429
          %v558 = vunpack.c.l.b16 %v430
          %v559 = vunpack.c.l.b16 %v431
          %v560 = vunpack.c.l.b16 %v432
          %v561 = vunpack.c.l.b16 %v433
          %v562 = vunpack.c.l.b16 %v434
          %v563 = vunpack.c.l.b16 %v435
          %v564 = vunpack.c.l.b16 %v436
          %v565 = vunpack.c.l.b16 %v437
          %v566 = vunpack.c.l.b16 %v438
          %v567 = vunpack.c.l.b16 %v439
          %v568 = vpack.c.b16 %v553, %v552
          %v569 = vpack.c.b16 %v555, %v554
          %v570 = vpack.c.b16 %v557, %v556
          %v571 = vpack.c.b16 %v559, %v558
          %v572 = vpack.c.b16 %v561, %v560
          %v573 = vpack.c.b16 %v563, %v562
          %v574 = vpack.c.b16 %v565, %v564
          %v575 = vpack.c.b16 %v567, %v566
          %584 = vmatprep.subr.bf16.mxu0 0
          %585 = vmatpush1.bf16.msra.mxu0 %v568
          %586 = vmatprep.subr.bf16.mxu0 0
          %587 = vmatpush1.bf16.msra.mxu0 %v569
          %588 = vmatprep.subr.bf16.mxu0 0
          %589 = vmatpush1.bf16.msra.mxu0 %v570
          %590 = vmatprep.subr.bf16.mxu0 0
          %591 = vmatpush1.bf16.msra.mxu0 %v571
          %592 = vmatprep.subr.bf16.mxu0 0
          %593 = vmatpush1.bf16.msra.mxu0 %v572
          %594 = vmatprep.subr.bf16.mxu0 0
          %595 = vmatpush1.bf16.msra.mxu0 %v573
          %596 = vmatprep.subr.bf16.mxu0 0
          %597 = vmatpush1.bf16.msra.mxu0 %v574
          %598 = vmatprep.subr.bf16.mxu0 0
          %599 = vmatpush1.bf16.msra.mxu0 %v575
          %600 = vmatprep.subr.bf16.mxu0 0
          %601 = vmatpush1.bf16.msra.mxu0 0
          %602 = vmatprep.subr.bf16.mxu0 0
          %603 = vmatpush1.bf16.msra.mxu0 0
          %604 = vmatprep.subr.bf16.mxu0 0
          %605 = vmatpush1.bf16.msra.mxu0 0
          %606 = vmatprep.subr.bf16.mxu0 0
          %607 = vmatpush1.bf16.msra.mxu0 0
          %608 = vmatprep.subr.bf16.mxu0 0
          %609 = vmatpush1.bf16.msra.mxu0 0
          %610 = vmatprep.subr.bf16.mxu0 0
          %611 = vmatpush1.bf16.msra.mxu0 0
          %612 = vmatprep.subr.bf16.mxu0 0
          %613 = vmatpush1.bf16.msra.mxu0 0
          %614 = vmatprep.subr.bf16.mxu0 0
          %615 = vmatpush1.bf16.msra.mxu0 0
          %616 = vmatprep.mubr.bf16.mxu0 0
          %617 = vmatmul.mubr.bf16.gmra.mrb[0].mxu0 %v504
          %v618 = vpop.f32.mrb[0].mxu0
          %v619 = vadd.f32 0.0, %v618
          %v620 = vpop.f32.mrb[0].mxu0
          %v621 = vpop.f32.mrb[0].mxu0
          %v622 = vadd.f32 0.0, %v621
          %v623 = vpop.f32.mrb[0].mxu0
          %624 = vmatprep.mubr.bf16.mxu0 0
          %625 = vmatmul.mubr.bf16.gmra.mrb[0].mxu0 %v505
          %v626 = vpop.f32.mrb[0].mxu0
          %v627 = vadd.f32 0.0, %v626
          %v628 = vpop.f32.mrb[0].mxu0
          %v629 = vpop.f32.mrb[0].mxu0
          %v630 = vadd.f32 0.0, %v629
          %v631 = vpop.f32.mrb[0].mxu0
          %632 = vmatprep.mubr.bf16.mxu0 0
          %633 = vmatmul.mubr.bf16.gmra.mrb[0].mxu0 %v506
          %v634 = vpop.f32.mrb[0].mxu0
          %v635 = vadd.f32 0.0, %v634
          %v636 = vpop.f32.mrb[0].mxu0
          %v637 = vpop.f32.mrb[0].mxu0
          %v638 = vadd.f32 0.0, %v637
          %v639 = vpop.f32.mrb[0].mxu0
          %640 = vmatprep.mubr.bf16.mxu0 0
          %641 = vmatmul.mubr.bf16.gmra.mrb[0].mxu0 %v507
          %v642 = vpop.f32.mrb[0].mxu0
          %v643 = vadd.f32 0.0, %v642
          %v644 = vpop.f32.mrb[0].mxu0
          %v645 = vpop.f32.mrb[0].mxu0
          %v646 = vadd.f32 0.0, %v645
          %v647 = vpop.f32.mrb[0].mxu0
          %648 = vmatprep.mubr.bf16.mxu0 0
          %649 = vmatmul.mubr.bf16.gmra.mrb[0].mxu0 %v508
          %v650 = vpop.f32.mrb[0].mxu0
          %v651 = vadd.f32 0.0, %v650
          %v652 = vpop.f32.mrb[0].mxu0
          %v653 = vpop.f32.mrb[0].mxu0
          %v654 = vadd.f32 0.0, %v653
          %v655 = vpop.f32.mrb[0].mxu0
          %656 = vmatprep.mubr.bf16.mxu0 0
          %657 = vmatmul.mubr.bf16.gmra.mrb[0].mxu0 %v509
          %v658 = vpop.f32.mrb[0].mxu0
          %v659 = vadd.f32 0.0, %v658
          %v660 = vpop.f32.mrb[0].mxu0
          %v661 = vpop.f32.mrb[0].mxu0
          %v662 = vadd.f32 0.0, %v661
          %v663 = vpop.f32.mrb[0].mxu0
          %664 = vmatprep.mubr.bf16.mxu0 0
          %665 = vmatmul.mubr.bf16.gmra.mrb[0].mxu0 %v510
          %v666 = vpop.f32.mrb[0].mxu0
          %v667 = vadd.f32 0.0, %v666
          %v668 = vpop.f32.mrb[0].mxu0
          %v669 = vpop.f32.mrb[0].mxu0
          %v670 = vadd.f32 0.0, %v669
          %v671 = vpop.f32.mrb[0].mxu0
          %672 = vmatprep.mubr.bf16.mxu0 0
          %673 = vmatmul.mubr.bf16.gmra.mrb[0].mxu0 %v511
          %v674 = vpop.f32.mrb[0].mxu0
          %v675 = vadd.f32 0.0, %v674
          %v676 = vpop.f32.mrb[0].mxu0
          %v677 = vpop.f32.mrb[0].mxu0
          %v678 = vadd.f32 0.0, %v677
          %v679 = vpop.f32.mrb[0].mxu0
          %680 = vmatprep.mubr.bf16.mxu0 0
          %681 = vmatmul.mubr.bf16.gmra.mrb[0].mxu0 %v512
          %v682 = vpop.f32.mrb[0].mxu0
          %v683 = vadd.f32 0.0, %v682
          %v684 = vpop.f32.mrb[0].mxu0
          %v685 = vpop.f32.mrb[0].mxu0
          %v686 = vadd.f32 0.0, %v685
          %v687 = vpop.f32.mrb[0].mxu0
          %688 = vmatprep.mubr.bf16.mxu0 0
          %689 = vmatmul.mubr.bf16.gmra.mrb[0].mxu0 %v513
          %v690 = vpop.f32.mrb[0].mxu0
          %v691 = vadd.f32 0.0, %v690
          %v692 = vpop.f32.mrb[0].mxu0
          %v693 = vpop.f32.mrb[0].mxu0
          %v694 = vadd.f32 0.0, %v693
          %v695 = vpop.f32.mrb[0].mxu0
          %696 = vmatprep.mubr.bf16.mxu0 0
          %697 = vmatmul.mubr.bf16.gmra.mrb[0].mxu0 %v514
          %v698 = vpop.f32.mrb[0].mxu0
          %v699 = vadd.f32 0.0, %v698
          %v700 = vpop.f32.mrb[0].mxu0
          %v701 = vpop.f32.mrb[0].mxu0
          %v702 = vadd.f32 0.0, %v701
          %v703 = vpop.f32.mrb[0].mxu0
          %704 = vmatprep.mubr.bf16.mxu0 0
          %705 = vmatmul.mubr.bf16.gmra.mrb[0].mxu0 %v515
          %v706 = vpop.f32.mrb[0].mxu0
          %v707 = vadd.f32 0.0, %v706
          %v708 = vpop.f32.mrb[0].mxu0
          %v709 = vpop.f32.mrb[0].mxu0
          %v710 = vadd.f32 0.0, %v709
          %v711 = vpop.f32.mrb[0].mxu0
          %712 = vmatprep.mubr.bf16.mxu0 0
          %713 = vmatmul.mubr.bf16.gmra.mrb[0].mxu0 %v516
          %v714 = vpop.f32.mrb[0].mxu0
          %v715 = vadd.f32 0.0, %v714
          %v716 = vpop.f32.mrb[0].mxu0
          %v717 = vpop.f32.mrb[0].mxu0
          %v718 = vadd.f32 0.0, %v717
          %v719 = vpop.f32.mrb[0].mxu0
          %720 = vmatprep.mubr.bf16.mxu0 0
          %721 = vmatmul.mubr.bf16.gmra.mrb[0].mxu0 %v517
          %v722 = vpop.f32.mrb[0].mxu0
          %v723 = vadd.f32 0.0, %v722
          %v724 = vpop.f32.mrb[0].mxu0
          %v725 = vpop.f32.mrb[0].mxu0
          %v726 = vadd.f32 0.0, %v725
          %v727 = vpop.f32.mrb[0].mxu0
          %728 = vmatprep.mubr.bf16.mxu0 0
          %729 = vmatmul.mubr.bf16.gmra.mrb[0].mxu0 %v518
          %v730 = vpop.f32.mrb[0].mxu0
          %v731 = vadd.f32 0.0, %v730
          %v732 = vpop.f32.mrb[0].mxu0
          %v733 = vpop.f32.mrb[0].mxu0
          %v734 = vadd.f32 0.0, %v733
          %v735 = vpop.f32.mrb[0].mxu0
          %736 = vmatprep.mubr.bf16.mxu0 0
          %737 = vmatmul.mubr.bf16.gmra.mrb[0].mxu0 %v519
          %v738 = vpop.f32.mrb[0].mxu0
          %v739 = vadd.f32 0.0, %v738
          %v740 = vpop.f32.mrb[0].mxu0
          %v741 = vpop.f32.mrb[0].mxu0
          %v742 = vadd.f32 0.0, %v741
          %v743 = vpop.f32.mrb[0].mxu0
          %744 = vdwg.mxu0
          %v745 = vpack.c.bf16 %v622, %v619
          %v746 = vpack.c.bf16 %v630, %v627
          %v747 = vpack.c.bf16 %v638, %v635
          %v748 = vpack.c.bf16 %v646, %v643
          %v749 = vpack.c.bf16 %v654, %v651
          %v750 = vpack.c.bf16 %v662, %v659
          %v751 = vpack.c.bf16 %v670, %v667
          %v752 = vpack.c.bf16 %v678, %v675
          %v753 = vpack.c.bf16 %v686, %v683
          %v754 = vpack.c.bf16 %v694, %v691
          %v755 = vpack.c.bf16 %v702, %v699
          %v756 = vpack.c.bf16 %v710, %v707
          %v757 = vpack.c.bf16 %v718, %v715
          %v758 = vpack.c.bf16 %v726, %v723
          %v759 = vpack.c.bf16 %v734, %v731
          %v760 = vpack.c.bf16 %v742, %v739
          %v761 = vld [vmem:[%s304] sm:$0xff]
          %v762 = vld [vmem:[%s304 + $0x8] sm:$0xff]
          %v763 = vld [vmem:[%s304 + $0x10] sm:$0xff]
          %v764 = vld [vmem:[%s304 + $0x18] sm:$0xff]
          %v765 = vld [vmem:[%s304 + $0x20] sm:$0xff]
          %v766 = vld [vmem:[%s304 + $0x28] sm:$0xff]
          %v767 = vld [vmem:[%s304 + $0x30] sm:$0xff]
          %v768 = vld [vmem:[%s304 + $0x38] sm:$0xff]
          %v769 = vld [vmem:[%s304 + $0x40] sm:$0xff]
          %v770 = vld [vmem:[%s304 + $0x48] sm:$0xff]
          %v771 = vld [vmem:[%s304 + $0x50] sm:$0xff]
          %v772 = vld [vmem:[%s304 + $0x58] sm:$0xff]
          %v773 = vld [vmem:[%s304 + $0x60] sm:$0xff]
          %v774 = vld [vmem:[%s304 + $0x68] sm:$0xff]
          %v775 = vld [vmem:[%s304 + $0x70] sm:$0xff]
          %v776 = vld [vmem:[%s304 + $0x78] sm:$0xff]
          %v777 = vld [vmem:[%s304 + $0x80] sm:$0xff]
          %v778 = vld [vmem:[%s304 + $0x88] sm:$0xff]
          %v779 = vld [vmem:[%s304 + $0x90] sm:$0xff]
          %v780 = vld [vmem:[%s304 + $0x98] sm:$0xff]
          %v781 = vld [vmem:[%s304 + $0xa0] sm:$0xff]
          %v782 = vld [vmem:[%s304 + $0xa8] sm:$0xff]
          %v783 = vld [vmem:[%s304 + $0xb0] sm:$0xff]
          %v784 = vld [vmem:[%s304 + $0xb8] sm:$0xff]
          %v785 = vld [vmem:[%s304 + $0xc0] sm:$0xff]
          %v786 = vld [vmem:[%s304 + $0xc8] sm:$0xff]
          %v787 = vld [vmem:[%s304 + $0xd0] sm:$0xff]
          %v788 = vld [vmem:[%s304 + $0xd8] sm:$0xff]
          %v789 = vld [vmem:[%s304 + $0xe0] sm:$0xff]
          %v790 = vld [vmem:[%s304 + $0xe8] sm:$0xff]
          %v791 = vld [vmem:[%s304 + $0xf0] sm:$0xff]
          %v792 = vld [vmem:[%s304 + $0xf8] sm:$0xff]
          %v793 = vld [vmem:[%s304 + $0x100] sm:$0xff]
          %v794 = vld [vmem:[%s304 + $0x108] sm:$0xff]
          %v795 = vld [vmem:[%s304 + $0x110] sm:$0xff]
          %v796 = vld [vmem:[%s304 + $0x118] sm:$0xff]
          %v797 = vld [vmem:[%s304 + $0x120] sm:$0xff]
          %v798 = vld [vmem:[%s304 + $0x128] sm:$0xff]
          %v799 = vld [vmem:[%s304 + $0x130] sm:$0xff]
          %v800 = vld [vmem:[%s304 + $0x138] sm:$0xff]
          %v801 = vld [vmem:[%s304 + $0x140] sm:$0xff]
          %v802 = vld [vmem:[%s304 + $0x148] sm:$0xff]
          %v803 = vld [vmem:[%s304 + $0x150] sm:$0xff]
          %v804 = vld [vmem:[%s304 + $0x158] sm:$0xff]
          %v805 = vld [vmem:[%s304 + $0x160] sm:$0xff]
          %v806 = vld [vmem:[%s304 + $0x168] sm:$0xff]
          %v807 = vld [vmem:[%s304 + $0x170] sm:$0xff]
          %v808 = vld [vmem:[%s304 + $0x178] sm:$0xff]
          %v809 = vld [vmem:[%s304 + $0x180] sm:$0xff]
          %v810 = vld [vmem:[%s304 + $0x188] sm:$0xff]
          %v811 = vld [vmem:[%s304 + $0x190] sm:$0xff]
          %v812 = vld [vmem:[%s304 + $0x198] sm:$0xff]
          %v813 = vld [vmem:[%s304 + $0x1a0] sm:$0xff]
          %v814 = vld [vmem:[%s304 + $0x1a8] sm:$0xff]
          %v815 = vld [vmem:[%s304 + $0x1b0] sm:$0xff]
          %v816 = vld [vmem:[%s304 + $0x1b8] sm:$0xff]
          %v817 = vld [vmem:[%s304 + $0x1c0] sm:$0xff]
          %v818 = vld [vmem:[%s304 + $0x1c8] sm:$0xff]
          %v819 = vld [vmem:[%s304 + $0x1d0] sm:$0xff]
          %v820 = vld [vmem:[%s304 + $0x1d8] sm:$0xff]
          %v821 = vld [vmem:[%s304 + $0x1e0] sm:$0xff]
          %v822 = vld [vmem:[%s304 + $0x1e8] sm:$0xff]
          %v823 = vld [vmem:[%s304 + $0x1f0] sm:$0xff]
          %v824 = vld [vmem:[%s304 + $0x1f8] sm:$0xff]
          %v825 = vld [vmem:[%s258] sm:$0xff]
          %v826 = vld [vmem:[%s258 + $0x8] sm:$0xff]
          %v827 = vld [vmem:[%s258 + $0x10] sm:$0xff]
          %v828 = vld [vmem:[%s258 + $0x18] sm:$0xff]
          %v829 = vld [vmem:[%s258 + $0x20] sm:$0xff]
          %v830 = vld [vmem:[%s258 + $0x28] sm:$0xff]
          %v831 = vld [vmem:[%s258 + $0x30] sm:$0xff]
          %v832 = vld [vmem:[%s258 + $0x38] sm:$0xff]
          %v833 = vld [vmem:[%s258 + $0x40] sm:$0xff]
          %v834 = vld [vmem:[%s258 + $0x48] sm:$0xff]
          %v835 = vld [vmem:[%s258 + $0x50] sm:$0xff]
          %v836 = vld [vmem:[%s258 + $0x58] sm:$0xff]
          %v837 = vld [vmem:[%s258 + $0x60] sm:$0xff]
          %v838 = vld [vmem:[%s258 + $0x68] sm:$0xff]
          %v839 = vld [vmem:[%s258 + $0x70] sm:$0xff]
          %v840 = vld [vmem:[%s258 + $0x78] sm:$0xff]
          %v841 = vld [vmem:[%s258 + $0x80] sm:$0xff]
          %v842 = vld [vmem:[%s258 + $0x88] sm:$0xff]
          %v843 = vld [vmem:[%s258 + $0x90] sm:$0xff]
          %v844 = vld [vmem:[%s258 + $0x98] sm:$0xff]
          %v845 = vld [vmem:[%s258 + $0xa0] sm:$0xff]
          %v846 = vld [vmem:[%s258 + $0xa8] sm:$0xff]
          %v847 = vld [vmem:[%s258 + $0xb0] sm:$0xff]
          %v848 = vld [vmem:[%s258 + $0xb8] sm:$0xff]
          %v849 = vld [vmem:[%s258 + $0xc0] sm:$0xff]
          %v850 = vld [vmem:[%s258 + $0xc8] sm:$0xff]
          %v851 = vld [vmem:[%s258 + $0xd0] sm:$0xff]
          %v852 = vld [vmem:[%s258 + $0xd8] sm:$0xff]
          %v853 = vld [vmem:[%s258 + $0xe0] sm:$0xff]
          %v854 = vld [vmem:[%s258 + $0xe8] sm:$0xff]
          %v855 = vld [vmem:[%s258 + $0xf0] sm:$0xff]
          %v856 = vld [vmem:[%s258 + $0xf8] sm:$0xff]
          %v857 = vld [vmem:[%s258 + $0x100] sm:$0xff]
          %v858 = vld [vmem:[%s258 + $0x108] sm:$0xff]
          %v859 = vld [vmem:[%s258 + $0x110] sm:$0xff]
          %v860 = vld [vmem:[%s258 + $0x118] sm:$0xff]
          %v861 = vld [vmem:[%s258 + $0x120] sm:$0xff]
          %v862 = vld [vmem:[%s258 + $0x128] sm:$0xff]
          %v863 = vld [vmem:[%s258 + $0x130] sm:$0xff]
          %v864 = vld [vmem:[%s258 + $0x138] sm:$0xff]
          %v865 = vld [vmem:[%s258 + $0x140] sm:$0xff]
          %v866 = vld [vmem:[%s258 + $0x148] sm:$0xff]
          %v867 = vld [vmem:[%s258 + $0x150] sm:$0xff]
          %v868 = vld [vmem:[%s258 + $0x158] sm:$0xff]
          %v869 = vld [vmem:[%s258 + $0x160] sm:$0xff]
          %v870 = vld [vmem:[%s258 + $0x168] sm:$0xff]
          %v871 = vld [vmem:[%s258 + $0x170] sm:$0xff]
          %v872 = vld [vmem:[%s258 + $0x178] sm:$0xff]
          %v873 = vld [vmem:[%s258 + $0x180] sm:$0xff]
          %v874 = vld [vmem:[%s258 + $0x188] sm:$0xff]
          %v875 = vld [vmem:[%s258 + $0x190] sm:$0xff]
          %v876 = vld [vmem:[%s258 + $0x198] sm:$0xff]
          %v877 = vld [vmem:[%s258 + $0x1a0] sm:$0xff]
          %v878 = vld [vmem:[%s258 + $0x1a8] sm:$0xff]
          %v879 = vld [vmem:[%s258 + $0x1b0] sm:$0xff]
          %v880 = vld [vmem:[%s258 + $0x1b8] sm:$0xff]
          %v881 = vld [vmem:[%s258 + $0x1c0] sm:$0xff]
          %v882 = vld [vmem:[%s258 + $0x1c8] sm:$0xff]
          %v883 = vld [vmem:[%s258 + $0x1d0] sm:$0xff]
          %v884 = vld [vmem:[%s258 + $0x1d8] sm:$0xff]
          %v885 = vld [vmem:[%s258 + $0x1e0] sm:$0xff]
          %v886 = vld [vmem:[%s258 + $0x1e8] sm:$0xff]
          %v887 = vld [vmem:[%s258 + $0x1f0] sm:$0xff]
          %v888 = vld [vmem:[%s258 + $0x1f8] sm:$0xff]
          %v953 = vunpack.c.l.b16 %v825
          %v954 = vunpack.c.h.b16 %v825
          %v955 = vunpack.c.l.b16 %v826
          %v956 = vunpack.c.h.b16 %v826
          %v957 = vunpack.c.l.b16 %v827
          %v958 = vunpack.c.h.b16 %v827
          %v959 = vunpack.c.l.b16 %v828
          %v960 = vunpack.c.h.b16 %v828
          %v961 = vunpack.c.l.b16 %v829
          %v962 = vunpack.c.h.b16 %v829
          %v963 = vunpack.c.l.b16 %v830
          %v964 = vunpack.c.h.b16 %v830
          %v965 = vunpack.c.l.b16 %v831
          %v966 = vunpack.c.h.b16 %v831
          %v967 = vunpack.c.l.b16 %v832
          %v968 = vunpack.c.h.b16 %v832
          %v969 = vunpack.c.l.b16 %v833
          %v970 = vunpack.c.h.b16 %v833
          %v971 = vunpack.c.l.b16 %v834
          %v972 = vunpack.c.h.b16 %v834
          %v973 = vunpack.c.l.b16 %v835
          %v974 = vunpack.c.h.b16 %v835
          %v975 = vunpack.c.l.b16 %v836
          %v976 = vunpack.c.h.b16 %v836
          %v977 = vunpack.c.l.b16 %v837
          %v978 = vunpack.c.h.b16 %v837
          %v979 = vunpack.c.l.b16 %v838
          %v980 = vunpack.c.h.b16 %v838
          %v981 = vunpack.c.l.b16 %v839
          %v982 = vunpack.c.h.b16 %v839
          %v983 = vunpack.c.l.b16 %v840
          %v984 = vunpack.c.h.b16 %v840
          %v985 = vunpack.c.l.b16 %v841
          %v986 = vunpack.c.h.b16 %v841
          %v987 = vunpack.c.l.b16 %v842
          %v988 = vunpack.c.h.b16 %v842
          %v989 = vunpack.c.l.b16 %v843
          %v990 = vunpack.c.h.b16 %v843
          %v991 = vunpack.c.l.b16 %v844
          %v992 = vunpack.c.h.b16 %v844
          %v993 = vunpack.c.l.b16 %v845
          %v994 = vunpack.c.h.b16 %v845
          %v995 = vunpack.c.l.b16 %v846
          %v996 = vunpack.c.h.b16 %v846
          %v997 = vunpack.c.l.b16 %v847
          %v998 = vunpack.c.h.b16 %v847
          %v999 = vunpack.c.l.b16 %v848
          %v1000 = vunpack.c.h.b16 %v848
          %v1001 = vunpack.c.l.b16 %v849
          %v1002 = vunpack.c.h.b16 %v849
          %v1003 = vunpack.c.l.b16 %v850
          %v1004 = vunpack.c.h.b16 %v850
          %v1005 = vunpack.c.l.b16 %v851
          %v1006 = vunpack.c.h.b16 %v851
          %v1007 = vunpack.c.l.b16 %v852
          %v1008 = vunpack.c.h.b16 %v852
          %v1009 = vunpack.c.l.b16 %v853
          %v1010 = vunpack.c.h.b16 %v853
          %v1011 = vunpack.c.l.b16 %v854
          %v1012 = vunpack.c.h.b16 %v854
          %v1013 = vunpack.c.l.b16 %v855
          %v1014 = vunpack.c.h.b16 %v855
          %v1015 = vunpack.c.l.b16 %v856
          %v1016 = vunpack.c.h.b16 %v856
          %v1017 = vunpack.c.l.b16 %v857
          %v1018 = vunpack.c.h.b16 %v857
          %v1019 = vunpack.c.l.b16 %v858
          %v1020 = vunpack.c.h.b16 %v858
          %v1021 = vunpack.c.l.b16 %v859
          %v1022 = vunpack.c.h.b16 %v859
          %v1023 = vunpack.c.l.b16 %v860
          %v1024 = vunpack.c.h.b16 %v860
          %v1025 = vunpack.c.l.b16 %v861
          %v1026 = vunpack.c.h.b16 %v861
          %v1027 = vunpack.c.l.b16 %v862
          %v1028 = vunpack.c.h.b16 %v862
          %v1029 = vunpack.c.l.b16 %v863
          %v1030 = vunpack.c.h.b16 %v863
          %v1031 = vunpack.c.l.b16 %v864
          %v1032 = vunpack.c.h.b16 %v864
          %v1033 = vunpack.c.l.b16 %v865
          %v1034 = vunpack.c.h.b16 %v865
          %v1035 = vunpack.c.l.b16 %v866
          %v1036 = vunpack.c.h.b16 %v866
          %v1037 = vunpack.c.l.b16 %v867
          %v1038 = vunpack.c.h.b16 %v867
          %v1039 = vunpack.c.l.b16 %v868
          %v1040 = vunpack.c.h.b16 %v868
          %v1041 = vunpack.c.l.b16 %v869
          %v1042 = vunpack.c.h.b16 %v869
          %v1043 = vunpack.c.l.b16 %v870
          %v1044 = vunpack.c.h.b16 %v870
          %v1045 = vunpack.c.l.b16 %v871
          %v1046 = vunpack.c.h.b16 %v871
          %v1047 = vunpack.c.l.b16 %v872
          %v1048 = vunpack.c.h.b16 %v872
          %v1049 = vunpack.c.l.b16 %v873
          %v1050 = vunpack.c.h.b16 %v873
          %v1051 = vunpack.c.l.b16 %v874
          %v1052 = vunpack.c.h.b16 %v874
          %v1053 = vunpack.c.l.b16 %v875
          %v1054 = vunpack.c.h.b16 %v875
          %v1055 = vunpack.c.l.b16 %v876
          %v1056 = vunpack.c.h.b16 %v876
          %v1057 = vunpack.c.l.b16 %v877
          %v1058 = vunpack.c.h.b16 %v877
          %v1059 = vunpack.c.l.b16 %v878
          %v1060 = vunpack.c.h.b16 %v878
          %v1061 = vunpack.c.l.b16 %v879
          %v1062 = vunpack.c.h.b16 %v879
          %v1063 = vunpack.c.l.b16 %v880
          %v1064 = vunpack.c.h.b16 %v880
          %v1065 = vunpack.c.l.b16 %v881
          %v1066 = vunpack.c.h.b16 %v881
          %v1067 = vunpack.c.l.b16 %v882
          %v1068 = vunpack.c.h.b16 %v882
          %v1069 = vunpack.c.l.b16 %v883
          %v1070 = vunpack.c.h.b16 %v883
          %v1071 = vunpack.c.l.b16 %v884
          %v1072 = vunpack.c.h.b16 %v884
          %v1073 = vunpack.c.l.b16 %v885
          %v1074 = vunpack.c.h.b16 %v885
          %v1075 = vunpack.c.l.b16 %v886
          %v1076 = vunpack.c.h.b16 %v886
          %v1077 = vunpack.c.l.b16 %v887
          %v1078 = vunpack.c.h.b16 %v887
          %v1079 = vunpack.c.l.b16 %v888
          %v1080 = vunpack.c.h.b16 %v888
          %v1081 = vpack.c.b16 %v955, %v953
          %v1082 = vpack.c.b16 %v956, %v954
          %v1083 = vpack.c.b16 %v959, %v957
          %v1084 = vpack.c.b16 %v960, %v958
          %v1085 = vpack.c.b16 %v963, %v961
          %v1086 = vpack.c.b16 %v964, %v962
          %v1087 = vpack.c.b16 %v967, %v965
          %v1088 = vpack.c.b16 %v968, %v966
          %v1089 = vpack.c.b16 %v971, %v969
          %v1090 = vpack.c.b16 %v972, %v970
          %v1091 = vpack.c.b16 %v975, %v973
          %v1092 = vpack.c.b16 %v976, %v974
          %v1093 = vpack.c.b16 %v979, %v977
          %v1094 = vpack.c.b16 %v980, %v978
          %v1095 = vpack.c.b16 %v983, %v981
          %v1096 = vpack.c.b16 %v984, %v982
          %v1097 = vpack.c.b16 %v987, %v985
          %v1098 = vpack.c.b16 %v988, %v986
          %v1099 = vpack.c.b16 %v991, %v989
          %v1100 = vpack.c.b16 %v992, %v990
          %v1101 = vpack.c.b16 %v995, %v993
          %v1102 = vpack.c.b16 %v996, %v994
          %v1103 = vpack.c.b16 %v999, %v997
          %v1104 = vpack.c.b16 %v1000, %v998
          %v1105 = vpack.c.b16 %v1003, %v1001
          %v1106 = vpack.c.b16 %v1004, %v1002
          %v1107 = vpack.c.b16 %v1007, %v1005
          %v1108 = vpack.c.b16 %v1008, %v1006
          %v1109 = vpack.c.b16 %v1011, %v1009
          %v1110 = vpack.c.b16 %v1012, %v1010
          %v1111 = vpack.c.b16 %v1015, %v1013
          %v1112 = vpack.c.b16 %v1016, %v1014
          %v1113 = vpack.c.b16 %v1019, %v1017
          %v1114 = vpack.c.b16 %v1020, %v1018
          %v1115 = vpack.c.b16 %v1023, %v1021
          %v1116 = vpack.c.b16 %v1024, %v1022
          %v1117 = vpack.c.b16 %v1027, %v1025
          %v1118 = vpack.c.b16 %v1028, %v1026
          %v1119 = vpack.c.b16 %v1031, %v1029
          %v1120 = vpack.c.b16 %v1032, %v1030
          %v1121 = vpack.c.b16 %v1035, %v1033
          %v1122 = vpack.c.b16 %v1036, %v1034
          %v1123 = vpack.c.b16 %v1039, %v1037
          %v1124 = vpack.c.b16 %v1040, %v1038
          %v1125 = vpack.c.b16 %v1043, %v1041
          %v1126 = vpack.c.b16 %v1044, %v1042
          %v1127 = vpack.c.b16 %v1047, %v1045
          %v1128 = vpack.c.b16 %v1048, %v1046
          %v1129 = vpack.c.b16 %v1051, %v1049
          %v1130 = vpack.c.b16 %v1052, %v1050
          %v1131 = vpack.c.b16 %v1055, %v1053
          %v1132 = vpack.c.b16 %v1056, %v1054
          %v1133 = vpack.c.b16 %v1059, %v1057
          %v1134 = vpack.c.b16 %v1060, %v1058
          %v1135 = vpack.c.b16 %v1063, %v1061
          %v1136 = vpack.c.b16 %v1064, %v1062
          %v1137 = vpack.c.b16 %v1067, %v1065
          %v1138 = vpack.c.b16 %v1068, %v1066
          %v1139 = vpack.c.b16 %v1071, %v1069
          %v1140 = vpack.c.b16 %v1072, %v1070
          %v1141 = vpack.c.b16 %v1075, %v1073
          %v1142 = vpack.c.b16 %v1076, %v1074
          %v1143 = vpack.c.b16 %v1079, %v1077
          %v1144 = vpack.c.b16 %v1080, %v1078
          %1209 = vmatprep.subr.bf16.mxu0 0
          %1210 = vmatpush1.bf16.msra.mxu0 %v745
          %1211 = vmatprep.subr.bf16.mxu0 0
          %1212 = vmatpush1.bf16.msra.mxu0 %v746
          %1213 = vmatprep.subr.bf16.mxu0 0
          %1214 = vmatpush1.bf16.msra.mxu0 %v747
          %1215 = vmatprep.subr.bf16.mxu0 0
          %1216 = vmatpush1.bf16.msra.mxu0 %v748
          %1217 = vmatprep.subr.bf16.mxu0 0
          %1218 = vmatpush1.bf16.msra.mxu0 %v749
          %1219 = vmatprep.subr.bf16.mxu0 0
          %1220 = vmatpush1.bf16.msra.mxu0 %v750
          %1221 = vmatprep.subr.bf16.mxu0 0
          %1222 = vmatpush1.bf16.msra.mxu0 %v751
          %1223 = vmatprep.subr.bf16.mxu0 0
          %1224 = vmatpush1.bf16.msra.mxu0 %v752
          %1225 = vmatprep.subr.bf16.mxu0 0
          %1226 = vmatpush1.bf16.msra.mxu0 %v753
          %1227 = vmatprep.subr.bf16.mxu0 0
          %1228 = vmatpush1.bf16.msra.mxu0 %v754
          %1229 = vmatprep.subr.bf16.mxu0 0
          %1230 = vmatpush1.bf16.msra.mxu0 %v755
          %1231 = vmatprep.subr.bf16.mxu0 0
          %1232 = vmatpush1.bf16.msra.mxu0 %v756
          %1233 = vmatprep.subr.bf16.mxu0 0
          %1234 = vmatpush1.bf16.msra.mxu0 %v757
          %1235 = vmatprep.subr.bf16.mxu0 0
          %1236 = vmatpush1.bf16.msra.mxu0 %v758
          %1237 = vmatprep.subr.bf16.mxu0 0
          %1238 = vmatpush1.bf16.msra.mxu0 %v759
          %1239 = vmatprep.subr.bf16.mxu0 0
          %1240 = vmatpush1.bf16.msra.mxu0 %v760
          %1241 = vmatprep.mubr.bf16.mxu0 %v1082
          %1242 = vmatmul.mubr.bf16.gmra.mrb[0].mxu0 %v1081
          %v1243 = vpop.f32.mrb[0].mxu0
          %v1244 = vadd.f32 0.0, %v1243
          %v1245 = vpop.f32.mrb[0].mxu0
          %v1246 = vpop.f32.mrb[0].mxu0
          %v1247 = vadd.f32 0.0, %v1246
          %v1248 = vpop.f32.mrb[0].mxu0
          %1249 = vmatprep.mubr.bf16.mxu0 %v1084
          %1250 = vmatmul.mubr.bf16.gmra.mrb[0].mxu0 %v1083
          %v1251 = vpop.f32.mrb[0].mxu0
          %v1252 = vadd.f32 0.0, %v1251
          %v1253 = vpop.f32.mrb[0].mxu0
          %v1254 = vpop.f32.mrb[0].mxu0
          %v1255 = vadd.f32 0.0, %v1254
          %v1256 = vpop.f32.mrb[0].mxu0
          %1257 = vmatprep.mubr.bf16.mxu0 %v1086
          %1258 = vmatmul.mubr.bf16.gmra.mrb[0].mxu0 %v1085
          %v1259 = vpop.f32.mrb[0].mxu0
          %v1260 = vadd.f32 0.0, %v1259
          %v1261 = vpop.f32.mrb[0].mxu0
          %v1262 = vpop.f32.mrb[0].mxu0
          %v1263 = vadd.f32 0.0, %v1262
          %v1264 = vpop.f32.mrb[0].mxu0
          %1265 = vmatprep.mubr.bf16.mxu0 %v1088
          %1266 = vmatmul.mubr.bf16.gmra.mrb[0].mxu0 %v1087
          %v1267 = vpop.f32.mrb[0].mxu0
          %v1268 = vadd.f32 0.0, %v1267
          %v1269 = vpop.f32.mrb[0].mxu0
          %v1270 = vpop.f32.mrb[0].mxu0
          %v1271 = vadd.f32 0.0, %v1270
          %v1272 = vpop.f32.mrb[0].mxu0
          %1273 = vmatprep.mubr.bf16.mxu0 %v1090
          %1274 = vmatmul.mubr.bf16.gmra.mrb[0].mxu0 %v1089
          %v1275 = vpop.f32.mrb[0].mxu0
          %v1276 = vadd.f32 0.0, %v1275
          %v1277 = vpop.f32.mrb[0].mxu0
          %v1278 = vpop.f32.mrb[0].mxu0
          %v1279 = vadd.f32 0.0, %v1278
          %v1280 = vpop.f32.mrb[0].mxu0
          %1281 = vmatprep.mubr.bf16.mxu0 %v1092
          %1282 = vmatmul.mubr.bf16.gmra.mrb[0].mxu0 %v1091
          %v1283 = vpop.f32.mrb[0].mxu0
          %v1284 = vadd.f32 0.0, %v1283
          %v1285 = vpop.f32.mrb[0].mxu0
          %v1286 = vpop.f32.mrb[0].mxu0
          %v1287 = vadd.f32 0.0, %v1286
          %v1288 = vpop.f32.mrb[0].mxu0
          %1289 = vmatprep.mubr.bf16.mxu0 %v1094
          %1290 = vmatmul.mubr.bf16.gmra.mrb[0].mxu0 %v1093
          %v1291 = vpop.f32.mrb[0].mxu0
          %v1292 = vadd.f32 0.0, %v1291
          %v1293 = vpop.f32.mrb[0].mxu0
          %v1294 = vpop.f32.mrb[0].mxu0
          %v1295 = vadd.f32 0.0, %v1294
          %v1296 = vpop.f32.mrb[0].mxu0
          %1297 = vmatprep.mubr.bf16.mxu0 %v1096
          %1298 = vmatmul.mubr.bf16.gmra.mrb[0].mxu0 %v1095
          %v1299 = vpop.f32.mrb[0].mxu0
          %v1300 = vadd.f32 0.0, %v1299
          %v1301 = vpop.f32.mrb[0].mxu0
          %v1302 = vpop.f32.mrb[0].mxu0
          %v1303 = vadd.f32 0.0, %v1302
          %v1304 = vpop.f32.mrb[0].mxu0
          %1305 = vmatprep.mubr.bf16.mxu0 %v1098
          %1306 = vmatmul.mubr.bf16.gmra.mrb[0].mxu0 %v1097
          %v1307 = vpop.f32.mrb[0].mxu0
          %v1308 = vadd.f32 0.0, %v1307
          %v1309 = vpop.f32.mrb[0].mxu0
          %v1310 = vpop.f32.mrb[0].mxu0
          %v1311 = vadd.f32 0.0, %v1310
          %v1312 = vpop.f32.mrb[0].mxu0
          %1313 = vmatprep.mubr.bf16.mxu0 %v1100
          %1314 = vmatmul.mubr.bf16.gmra.mrb[0].mxu0 %v1099
          %v1315 = vpop.f32.mrb[0].mxu0
          %v1316 = vadd.f32 0.0, %v1315
          %v1317 = vpop.f32.mrb[0].mxu0
          %v1318 = vpop.f32.mrb[0].mxu0
          %v1319 = vadd.f32 0.0, %v1318
          %v1320 = vpop.f32.mrb[0].mxu0
          %1321 = vmatprep.mubr.bf16.mxu0 %v1102
          %1322 = vmatmul.mubr.bf16.gmra.mrb[0].mxu0 %v1101
          %v1323 = vpop.f32.mrb[0].mxu0
          %v1324 = vadd.f32 0.0, %v1323
          %v1325 = vpop.f32.mrb[0].mxu0
          %v1326 = vpop.f32.mrb[0].mxu0
          %v1327 = vadd.f32 0.0, %v1326
          %v1328 = vpop.f32.mrb[0].mxu0
          %1329 = vmatprep.mubr.bf16.mxu0 %v1104
          %1330 = vmatmul.mubr.bf16.gmra.mrb[0].mxu0 %v1103
          %v1331 = vpop.f32.mrb[0].mxu0
          %v1332 = vadd.f32 0.0, %v1331
          %v1333 = vpop.f32.mrb[0].mxu0
          %v1334 = vpop.f32.mrb[0].mxu0
          %v1335 = vadd.f32 0.0, %v1334
          %v1336 = vpop.f32.mrb[0].mxu0
          %1337 = vmatprep.mubr.bf16.mxu0 %v1106
          %1338 = vmatmul.mubr.bf16.gmra.mrb[0].mxu0 %v1105
          %v1339 = vpop.f32.mrb[0].mxu0
          %v1340 = vadd.f32 0.0, %v1339
          %v1341 = vpop.f32.mrb[0].mxu0
          %v1342 = vpop.f32.mrb[0].mxu0
          %v1343 = vadd.f32 0.0, %v1342
          %v1344 = vpop.f32.mrb[0].mxu0
          %1345 = vmatprep.mubr.bf16.mxu0 %v1108
          %1346 = vmatmul.mubr.bf16.gmra.mrb[0].mxu0 %v1107
          %v1347 = vpop.f32.mrb[0].mxu0
          %v1348 = vadd.f32 0.0, %v1347
          %v1349 = vpop.f32.mrb[0].mxu0
          %v1350 = vpop.f32.mrb[0].mxu0
          %v1351 = vadd.f32 0.0, %v1350
          %v1352 = vpop.f32.mrb[0].mxu0
          %1353 = vmatprep.mubr.bf16.mxu0 %v1110
          %1354 = vmatmul.mubr.bf16.gmra.mrb[0].mxu0 %v1109
          %v1355 = vpop.f32.mrb[0].mxu0
          %v1356 = vadd.f32 0.0, %v1355
          %v1357 = vpop.f32.mrb[0].mxu0
          %v1358 = vpop.f32.mrb[0].mxu0
          %v1359 = vadd.f32 0.0, %v1358
          %v1360 = vpop.f32.mrb[0].mxu0
          %1361 = vmatprep.mubr.bf16.mxu0 %v1112
          %1362 = vmatmul.mubr.bf16.gmra.mrb[0].mxu0 %v1111
          %v1363 = vpop.f32.mrb[0].mxu0
          %v1364 = vadd.f32 0.0, %v1363
          %v1365 = vpop.f32.mrb[0].mxu0
          %v1366 = vpop.f32.mrb[0].mxu0
          %v1367 = vadd.f32 0.0, %v1366
          %v1368 = vpop.f32.mrb[0].mxu0
          %1369 = vmatprep.mubr.bf16.mxu0 %v1114
          %1370 = vmatmul.mubr.bf16.gmra.mrb[0].mxu0 %v1113
          %v1371 = vpop.f32.mrb[0].mxu0
          %v1372 = vadd.f32 0.0, %v1371
          %v1373 = vpop.f32.mrb[0].mxu0
          %v1374 = vpop.f32.mrb[0].mxu0
          %v1375 = vadd.f32 0.0, %v1374
          %v1376 = vpop.f32.mrb[0].mxu0
          %1377 = vmatprep.mubr.bf16.mxu0 %v1116
          %1378 = vmatmul.mubr.bf16.gmra.mrb[0].mxu0 %v1115
          %v1379 = vpop.f32.mrb[0].mxu0
          %v1380 = vadd.f32 0.0, %v1379
          %v1381 = vpop.f32.mrb[0].mxu0
          %v1382 = vpop.f32.mrb[0].mxu0
          %v1383 = vadd.f32 0.0, %v1382
          %v1384 = vpop.f32.mrb[0].mxu0
          %1385 = vmatprep.mubr.bf16.mxu0 %v1118
          %1386 = vmatmul.mubr.bf16.gmra.mrb[0].mxu0 %v1117
          %v1387 = vpop.f32.mrb[0].mxu0
          %v1388 = vadd.f32 0.0, %v1387
          %v1389 = vpop.f32.mrb[0].mxu0
          %v1390 = vpop.f32.mrb[0].mxu0
          %v1391 = vadd.f32 0.0, %v1390
          %v1392 = vpop.f32.mrb[0].mxu0
          %1393 = vmatprep.mubr.bf16.mxu0 %v1120
          %1394 = vmatmul.mubr.bf16.gmra.mrb[0].mxu0 %v1119
          %v1395 = vpop.f32.mrb[0].mxu0
          %v1396 = vadd.f32 0.0, %v1395
          %v1397 = vpop.f32.mrb[0].mxu0
          %v1398 = vpop.f32.mrb[0].mxu0
          %v1399 = vadd.f32 0.0, %v1398
          %v1400 = vpop.f32.mrb[0].mxu0
          %1401 = vmatprep.mubr.bf16.mxu0 %v1122
          %1402 = vmatmul.mubr.bf16.gmra.mrb[0].mxu0 %v1121
          %v1403 = vpop.f32.mrb[0].mxu0
          %v1404 = vadd.f32 0.0, %v1403
          %v1405 = vpop.f32.mrb[0].mxu0
          %v1406 = vpop.f32.mrb[0].mxu0
          %v1407 = vadd.f32 0.0, %v1406
          %v1408 = vpop.f32.mrb[0].mxu0
          %1409 = vmatprep.mubr.bf16.mxu0 %v1124
          %1410 = vmatmul.mubr.bf16.gmra.mrb[0].mxu0 %v1123
          %v1411 = vpop.f32.mrb[0].mxu0
          %v1412 = vadd.f32 0.0, %v1411
          %v1413 = vpop.f32.mrb[0].mxu0
          %v1414 = vpop.f32.mrb[0].mxu0
          %v1415 = vadd.f32 0.0, %v1414
          %v1416 = vpop.f32.mrb[0].mxu0
          %1417 = vmatprep.mubr.bf16.mxu0 %v1126
          %1418 = vmatmul.mubr.bf16.gmra.mrb[0].mxu0 %v1125
          %v1419 = vpop.f32.mrb[0].mxu0
          %v1420 = vadd.f32 0.0, %v1419
          %v1421 = vpop.f32.mrb[0].mxu0
          %v1422 = vpop.f32.mrb[0].mxu0
          %v1423 = vadd.f32 0.0, %v1422
          %v1424 = vpop.f32.mrb[0].mxu0
          %1425 = vmatprep.mubr.bf16.mxu0 %v1128
          %1426 = vmatmul.mubr.bf16.gmra.mrb[0].mxu0 %v1127
          %v1427 = vpop.f32.mrb[0].mxu0
          %v1428 = vadd.f32 0.0, %v1427
          %v1429 = vpop.f32.mrb[0].mxu0
          %v1430 = vpop.f32.mrb[0].mxu0
          %v1431 = vadd.f32 0.0, %v1430
          %v1432 = vpop.f32.mrb[0].mxu0
          %1433 = vmatprep.mubr.bf16.mxu0 %v1130
          %1434 = vmatmul.mubr.bf16.gmra.mrb[0].mxu0 %v1129
          %v1435 = vpop.f32.mrb[0].mxu0
          %v1436 = vadd.f32 0.0, %v1435
          %v1437 = vpop.f32.mrb[0].mxu0
          %v1438 = vpop.f32.mrb[0].mxu0
          %v1439 = vadd.f32 0.0, %v1438
          %v1440 = vpop.f32.mrb[0].mxu0
          %1441 = vmatprep.mubr.bf16.mxu0 %v1132
          %1442 = vmatmul.mubr.bf16.gmra.mrb[0].mxu0 %v1131
          %v1443 = vpop.f32.mrb[0].mxu0
          %v1444 = vadd.f32 0.0, %v1443
          %v1445 = vpop.f32.mrb[0].mxu0
          %v1446 = vpop.f32.mrb[0].mxu0
          %v1447 = vadd.f32 0.0, %v1446
          %v1448 = vpop.f32.mrb[0].mxu0
          %1449 = vmatprep.mubr.bf16.mxu0 %v1134
          %1450 = vmatmul.mubr.bf16.gmra.mrb[0].mxu0 %v1133
          %v1451 = vpop.f32.mrb[0].mxu0
          %v1452 = vadd.f32 0.0, %v1451
          %v1453 = vpop.f32.mrb[0].mxu0
          %v1454 = vpop.f32.mrb[0].mxu0
          %v1455 = vadd.f32 0.0, %v1454
          %v1456 = vpop.f32.mrb[0].mxu0
          %1457 = vmatprep.mubr.bf16.mxu0 %v1136
          %1458 = vmatmul.mubr.bf16.gmra.mrb[0].mxu0 %v1135
          %v1459 = vpop.f32.mrb[0].mxu0
          %v1460 = vadd.f32 0.0, %v1459
          %v1461 = vpop.f32.mrb[0].mxu0
          %v1462 = vpop.f32.mrb[0].mxu0
          %v1463 = vadd.f32 0.0, %v1462
          %v1464 = vpop.f32.mrb[0].mxu0
          %1465 = vmatprep.mubr.bf16.mxu0 %v1138
          %1466 = vmatmul.mubr.bf16.gmra.mrb[0].mxu0 %v1137
          %v1467 = vpop.f32.mrb[0].mxu0
          %v1468 = vadd.f32 0.0, %v1467
          %v1469 = vpop.f32.mrb[0].mxu0
          %v1470 = vpop.f32.mrb[0].mxu0
          %v1471 = vadd.f32 0.0, %v1470
          %v1472 = vpop.f32.mrb[0].mxu0
          %1473 = vmatprep.mubr.bf16.mxu0 %v1140
          %1474 = vmatmul.mubr.bf16.gmra.mrb[0].mxu0 %v1139
          %v1475 = vpop.f32.mrb[0].mxu0
          %v1476 = vadd.f32 0.0, %v1475
          %v1477 = vpop.f32.mrb[0].mxu0
          %v1478 = vpop.f32.mrb[0].mxu0
          %v1479 = vadd.f32 0.0, %v1478
          %v1480 = vpop.f32.mrb[0].mxu0
          %1481 = vmatprep.mubr.bf16.mxu0 %v1142
          %1482 = vmatmul.mubr.bf16.gmra.mrb[0].mxu0 %v1141
          %v1483 = vpop.f32.mrb[0].mxu0
          %v1484 = vadd.f32 0.0, %v1483
          %v1485 = vpop.f32.mrb[0].mxu0
          %v1486 = vpop.f32.mrb[0].mxu0
          %v1487 = vadd.f32 0.0, %v1486
          %v1488 = vpop.f32.mrb[0].mxu0
          %1489 = vmatprep.mubr.bf16.mxu0 %v1144
          %1490 = vmatmul.mubr.bf16.gmra.mrb[0].mxu0 %v1143
          %v1491 = vpop.f32.mrb[0].mxu0
          %v1492 = vadd.f32 0.0, %v1491
          %v1493 = vpop.f32.mrb[0].mxu0
          %v1494 = vpop.f32.mrb[0].mxu0
          %v1495 = vadd.f32 0.0, %v1494
          %v1496 = vpop.f32.mrb[0].mxu0
          %1497 = vdwg.mxu0
          %v1498 = vadd.f32 %v761, %v1244
          %v1499 = vadd.f32 %v762, %v1247
          %v1500 = vadd.f32 %v763, %v1252
          %v1501 = vadd.f32 %v764, %v1255
          %v1502 = vadd.f32 %v765, %v1260
          %v1503 = vadd.f32 %v766, %v1263
          %v1504 = vadd.f32 %v767, %v1268
          %v1505 = vadd.f32 %v768, %v1271
          %v1506 = vadd.f32 %v769, %v1276
          %v1507 = vadd.f32 %v770, %v1279
          %v1508 = vadd.f32 %v771, %v1284
          %v1509 = vadd.f32 %v772, %v1287
          %v1510 = vadd.f32 %v773, %v1292
          %v1511 = vadd.f32 %v774, %v1295
          %v1512 = vadd.f32 %v775, %v1300
          %v1513 = vadd.f32 %v776, %v1303
          %v1514 = vadd.f32 %v777, %v1308
          %v1515 = vadd.f32 %v778, %v1311
          %v1516 = vadd.f32 %v779, %v1316
          %v1517 = vadd.f32 %v780, %v1319
          %v1518 = vadd.f32 %v781, %v1324
          %v1519 = vadd.f32 %v782, %v1327
          %v1520 = vadd.f32 %v783, %v1332
          %v1521 = vadd.f32 %v784, %v1335
          %v1522 = vadd.f32 %v785, %v1340
          %v1523 = vadd.f32 %v786, %v1343
          %v1524 = vadd.f32 %v787, %v1348
          %v1525 = vadd.f32 %v788, %v1351
          %v1526 = vadd.f32 %v789, %v1356
          %v1527 = vadd.f32 %v790, %v1359
          %v1528 = vadd.f32 %v791, %v1364
          %v1529 = vadd.f32 %v792, %v1367
          %v1530 = vadd.f32 %v793, %v1372
          %v1531 = vadd.f32 %v794, %v1375
          %v1532 = vadd.f32 %v795, %v1380
          %v1533 = vadd.f32 %v796, %v1383
          %v1534 = vadd.f32 %v797, %v1388
          %v1535 = vadd.f32 %v798, %v1391
          %v1536 = vadd.f32 %v799, %v1396
          %v1537 = vadd.f32 %v800, %v1399
          %v1538 = vadd.f32 %v801, %v1404
          %v1539 = vadd.f32 %v802, %v1407
          %v1540 = vadd.f32 %v803, %v1412
          %v1541 = vadd.f32 %v804, %v1415
          %v1542 = vadd.f32 %v805, %v1420
          %v1543 = vadd.f32 %v806, %v1423
          %v1544 = vadd.f32 %v807, %v1428
          %v1545 = vadd.f32 %v808, %v1431
          %v1546 = vadd.f32 %v809, %v1436
          %v1547 = vadd.f32 %v810, %v1439
          %v1548 = vadd.f32 %v811, %v1444
          %v1549 = vadd.f32 %v812, %v1447
          %v1550 = vadd.f32 %v813, %v1452
          %v1551 = vadd.f32 %v814, %v1455
          %v1552 = vadd.f32 %v815, %v1460
          %v1553 = vadd.f32 %v816, %v1463
          %v1554 = vadd.f32 %v817, %v1468
          %v1555 = vadd.f32 %v818, %v1471
          %v1556 = vadd.f32 %v819, %v1476
          %v1557 = vadd.f32 %v820, %v1479
          %v1558 = vadd.f32 %v821, %v1484
          %v1559 = vadd.f32 %v822, %v1487
          %v1560 = vadd.f32 %v823, %v1492
          %v1561 = vadd.f32 %v824, %v1495
          %1562 = vst [vmem:[%s304] sm:$0xff] %v1498
          %1563 = vst [vmem:[%s304 + $0x8] sm:$0xff] %v1499
          %1564 = vst [vmem:[%s304 + $0x10] sm:$0xff] %v1500
          %1565 = vst [vmem:[%s304 + $0x18] sm:$0xff] %v1501
          %1566 = vst [vmem:[%s304 + $0x20] sm:$0xff] %v1502
          %1567 = vst [vmem:[%s304 + $0x28] sm:$0xff] %v1503
          %1568 = vst [vmem:[%s304 + $0x30] sm:$0xff] %v1504
          %1569 = vst [vmem:[%s304 + $0x38] sm:$0xff] %v1505
          %1570 = vst [vmem:[%s304 + $0x40] sm:$0xff] %v1506
          %1571 = vst [vmem:[%s304 + $0x48] sm:$0xff] %v1507
          %1572 = vst [vmem:[%s304 + $0x50] sm:$0xff] %v1508
          %1573 = vst [vmem:[%s304 + $0x58] sm:$0xff] %v1509
          %1574 = vst [vmem:[%s304 + $0x60] sm:$0xff] %v1510
          %1575 = vst [vmem:[%s304 + $0x68] sm:$0xff] %v1511
          %1576 = vst [vmem:[%s304 + $0x70] sm:$0xff] %v1512
          %1577 = vst [vmem:[%s304 + $0x78] sm:$0xff] %v1513
          %1578 = vst [vmem:[%s304 + $0x80] sm:$0xff] %v1514
          %1579 = vst [vmem:[%s304 + $0x88] sm:$0xff] %v1515
          %1580 = vst [vmem:[%s304 + $0x90] sm:$0xff] %v1516
          %1581 = vst [vmem:[%s304 + $0x98] sm:$0xff] %v1517
          %1582 = vst [vmem:[%s304 + $0xa0] sm:$0xff] %v1518
          %1583 = vst [vmem:[%s304 + $0xa8] sm:$0xff] %v1519
          %1584 = vst [vmem:[%s304 + $0xb0] sm:$0xff] %v1520
          %1585 = vst [vmem:[%s304 + $0xb8] sm:$0xff] %v1521
          %1586 = vst [vmem:[%s304 + $0xc0] sm:$0xff] %v1522
          %1587 = vst [vmem:[%s304 + $0xc8] sm:$0xff] %v1523
          %1588 = vst [vmem:[%s304 + $0xd0] sm:$0xff] %v1524
          %1589 = vst [vmem:[%s304 + $0xd8] sm:$0xff] %v1525
          %1590 = vst [vmem:[%s304 + $0xe0] sm:$0xff] %v1526
          %1591 = vst [vmem:[%s304 + $0xe8] sm:$0xff] %v1527
          %1592 = vst [vmem:[%s304 + $0xf0] sm:$0xff] %v1528
          %1593 = vst [vmem:[%s304 + $0xf8] sm:$0xff] %v1529
          %1594 = vst [vmem:[%s304 + $0x100] sm:$0xff] %v1530
          %1595 = vst [vmem:[%s304 + $0x108] sm:$0xff] %v1531
          %1596 = vst [vmem:[%s304 + $0x110] sm:$0xff] %v1532
          %1597 = vst [vmem:[%s304 + $0x118] sm:$0xff] %v1533
          %1598 = vst [vmem:[%s304 + $0x120] sm:$0xff] %v1534
          %1599 = vst [vmem:[%s304 + $0x128] sm:$0xff] %v1535
          %1600 = vst [vmem:[%s304 + $0x130] sm:$0xff] %v1536
          %1601 = vst [vmem:[%s304 + $0x138] sm:$0xff] %v1537
          %1602 = vst [vmem:[%s304 + $0x140] sm:$0xff] %v1538
          %1603 = vst [vmem:[%s304 + $0x148] sm:$0xff] %v1539
          %1604 = vst [vmem:[%s304 + $0x150] sm:$0xff] %v1540
          %1605 = vst [vmem:[%s304 + $0x158] sm:$0xff] %v1541
          %1606 = vst [vmem:[%s304 + $0x160] sm:$0xff] %v1542
          %1607 = vst [vmem:[%s304 + $0x168] sm:$0xff] %v1543
          %1608 = vst [vmem:[%s304 + $0x170] sm:$0xff] %v1544
          %1609 = vst [vmem:[%s304 + $0x178] sm:$0xff] %v1545
          %1610 = vst [vmem:[%s304 + $0x180] sm:$0xff] %v1546
          %1611 = vst [vmem:[%s304 + $0x188] sm:$0xff] %v1547
          %1612 = vst [vmem:[%s304 + $0x190] sm:$0xff] %v1548
          %1613 = vst [vmem:[%s304 + $0x198] sm:$0xff] %v1549
          %1614 = vst [vmem:[%s304 + $0x1a0] sm:$0xff] %v1550
          %1615 = vst [vmem:[%s304 + $0x1a8] sm:$0xff] %v1551
          %1616 = vst [vmem:[%s304 + $0x1b0] sm:$0xff] %v1552
          %1617 = vst [vmem:[%s304 + $0x1b8] sm:$0xff] %v1553
          %1618 = vst [vmem:[%s304 + $0x1c0] sm:$0xff] %v1554
          %1619 = vst [vmem:[%s304 + $0x1c8] sm:$0xff] %v1555
          %1620 = vst [vmem:[%s304 + $0x1d0] sm:$0xff] %v1556
          %1621 = vst [vmem:[%s304 + $0x1d8] sm:$0xff] %v1557
          %1622 = vst [vmem:[%s304 + $0x1e0] sm:$0xff] %v1558
          %1623 = vst [vmem:[%s304 + $0x1e8] sm:$0xff] %v1559
          %1624 = vst [vmem:[%s304 + $0x1f0] sm:$0xff] %v1560
          %1625 = vst [vmem:[%s304 + $0x1f8] sm:$0xff] %v1561
        $region60: #{tpu_custom_call.1} parent=35 // pred_fallthru
          _
        %p1626 = scmp.eq.s32.totalorder %s35, 3
        // Predicated region
        $region61: #{tpu_custom_call.1} parent=35 // pred_check
          %p1627 = pneg %p1626
        $region62: #{tpu_custom_call.1} parent=35 // pred_check_branch
          %1629 = sbr.rel (%p1627) target = $region64
        $region63: #{tpu_custom_call.1} parent=35 // pred_region
          %v1630 = vld [vmem:[%s304] sm:$0xff]
          %v1631 = vld [vmem:[%s304 + $0x8] sm:$0xff]
          %v1632 = vld [vmem:[%s304 + $0x10] sm:$0xff]
          %v1633 = vld [vmem:[%s304 + $0x18] sm:$0xff]
          %v1634 = vld [vmem:[%s304 + $0x20] sm:$0xff]
          %v1635 = vld [vmem:[%s304 + $0x28] sm:$0xff]
          %v1636 = vld [vmem:[%s304 + $0x30] sm:$0xff]
          %v1637 = vld [vmem:[%s304 + $0x38] sm:$0xff]
          %v1638 = vld [vmem:[%s304 + $0x40] sm:$0xff]
          %v1639 = vld [vmem:[%s304 + $0x48] sm:$0xff]
          %v1640 = vld [vmem:[%s304 + $0x50] sm:$0xff]
          %v1641 = vld [vmem:[%s304 + $0x58] sm:$0xff]
          %v1642 = vld [vmem:[%s304 + $0x60] sm:$0xff]
          %v1643 = vld [vmem:[%s304 + $0x68] sm:$0xff]
          %v1644 = vld [vmem:[%s304 + $0x70] sm:$0xff]
          %v1645 = vld [vmem:[%s304 + $0x78] sm:$0xff]
          %v1646 = vld [vmem:[%s304 + $0x80] sm:$0xff]
          %v1647 = vld [vmem:[%s304 + $0x88] sm:$0xff]
          %v1648 = vld [vmem:[%s304 + $0x90] sm:$0xff]
          %v1649 = vld [vmem:[%s304 + $0x98] sm:$0xff]
          %v1650 = vld [vmem:[%s304 + $0xa0] sm:$0xff]
          %v1651 = vld [vmem:[%s304 + $0xa8] sm:$0xff]
          %v1652 = vld [vmem:[%s304 + $0xb0] sm:$0xff]
          %v1653 = vld [vmem:[%s304 + $0xb8] sm:$0xff]
          %v1654 = vld [vmem:[%s304 + $0xc0] sm:$0xff]
          %v1655 = vld [vmem:[%s304 + $0xc8] sm:$0xff]
          %v1656 = vld [vmem:[%s304 + $0xd0] sm:$0xff]
          %v1657 = vld [vmem:[%s304 + $0xd8] sm:$0xff]
          %v1658 = vld [vmem:[%s304 + $0xe0] sm:$0xff]
          %v1659 = vld [vmem:[%s304 + $0xe8] sm:$0xff]
          %v1660 = vld [vmem:[%s304 + $0xf0] sm:$0xff]
          %v1661 = vld [vmem:[%s304 + $0xf8] sm:$0xff]
          %v1662 = vld [vmem:[%s304 + $0x100] sm:$0xff]
          %v1663 = vld [vmem:[%s304 + $0x108] sm:$0xff]
          %v1664 = vld [vmem:[%s304 + $0x110] sm:$0xff]
          %v1665 = vld [vmem:[%s304 + $0x118] sm:$0xff]
          %v1666 = vld [vmem:[%s304 + $0x120] sm:$0xff]
          %v1667 = vld [vmem:[%s304 + $0x128] sm:$0xff]
          %v1668 = vld [vmem:[%s304 + $0x130] sm:$0xff]
          %v1669 = vld [vmem:[%s304 + $0x138] sm:$0xff]
          %v1670 = vld [vmem:[%s304 + $0x140] sm:$0xff]
          %v1671 = vld [vmem:[%s304 + $0x148] sm:$0xff]
          %v1672 = vld [vmem:[%s304 + $0x150] sm:$0xff]
          %v1673 = vld [vmem:[%s304 + $0x158] sm:$0xff]
          %v1674 = vld [vmem:[%s304 + $0x160] sm:$0xff]
          %v1675 = vld [vmem:[%s304 + $0x168] sm:$0xff]
          %v1676 = vld [vmem:[%s304 + $0x170] sm:$0xff]
          %v1677 = vld [vmem:[%s304 + $0x178] sm:$0xff]
          %v1678 = vld [vmem:[%s304 + $0x180] sm:$0xff]
          %v1679 = vld [vmem:[%s304 + $0x188] sm:$0xff]
          %v1680 = vld [vmem:[%s304 + $0x190] sm:$0xff]
          %v1681 = vld [vmem:[%s304 + $0x198] sm:$0xff]
          %v1682 = vld [vmem:[%s304 + $0x1a0] sm:$0xff]
          %v1683 = vld [vmem:[%s304 + $0x1a8] sm:$0xff]
          %v1684 = vld [vmem:[%s304 + $0x1b0] sm:$0xff]
          %v1685 = vld [vmem:[%s304 + $0x1b8] sm:$0xff]
          %v1686 = vld [vmem:[%s304 + $0x1c0] sm:$0xff]
          %v1687 = vld [vmem:[%s304 + $0x1c8] sm:$0xff]
          %v1688 = vld [vmem:[%s304 + $0x1d0] sm:$0xff]
          %v1689 = vld [vmem:[%s304 + $0x1d8] sm:$0xff]
          %v1690 = vld [vmem:[%s304 + $0x1e0] sm:$0xff]
          %v1691 = vld [vmem:[%s304 + $0x1e8] sm:$0xff]
          %v1692 = vld [vmem:[%s304 + $0x1f0] sm:$0xff]
          %v1693 = vld [vmem:[%s304 + $0x1f8] sm:$0xff]
          %v1694 = vtanh.pop %v1630
          %v1695 = vtanh.pop %v1631
          %v1696 = vtanh.pop %v1632
          %v1697 = vtanh.pop %v1633
          %v1698 = vtanh.pop %v1634
          %v1699 = vtanh.pop %v1635
          %v1700 = vtanh.pop %v1636
          %v1701 = vtanh.pop %v1637
          %v1702 = vtanh.pop %v1638
          %v1703 = vtanh.pop %v1639
          %v1704 = vtanh.pop %v1640
          %v1705 = vtanh.pop %v1641
          %v1706 = vtanh.pop %v1642
          %v1707 = vtanh.pop %v1643
          %v1708 = vtanh.pop %v1644
          %v1709 = vtanh.pop %v1645
          %v1710 = vtanh.pop %v1646
          %v1711 = vtanh.pop %v1647
          %v1712 = vtanh.pop %v1648
          %v1713 = vtanh.pop %v1649
          %v1714 = vtanh.pop %v1650
          %v1715 = vtanh.pop %v1651
          %v1716 = vtanh.pop %v1652
          %v1717 = vtanh.pop %v1653
          %v1718 = vtanh.pop %v1654
          %v1719 = vtanh.pop %v1655
          %v1720 = vtanh.pop %v1656
          %v1721 = vtanh.pop %v1657
          %v1722 = vtanh.pop %v1658
          %v1723 = vtanh.pop %v1659
          %v1724 = vtanh.pop %v1660
          %v1725 = vtanh.pop %v1661
          %v1726 = vtanh.pop %v1662
          %v1727 = vtanh.pop %v1663
          %v1728 = vtanh.pop %v1664
          %v1729 = vtanh.pop %v1665
          %v1730 = vtanh.pop %v1666
          %v1731 = vtanh.pop %v1667
          %v1732 = vtanh.pop %v1668
          %v1733 = vtanh.pop %v1669
          %v1734 = vtanh.pop %v1670
          %v1735 = vtanh.pop %v1671
          %v1736 = vtanh.pop %v1672
          %v1737 = vtanh.pop %v1673
          %v1738 = vtanh.pop %v1674
          %v1739 = vtanh.pop %v1675
          %v1740 = vtanh.pop %v1676
          %v1741 = vtanh.pop %v1677
          %v1742 = vtanh.pop %v1678
          %v1743 = vtanh.pop %v1679
          %v1744 = vtanh.pop %v1680
          %v1745 = vtanh.pop %v1681
          %v1746 = vtanh.pop %v1682
          %v1747 = vtanh.pop %v1683
          %v1748 = vtanh.pop %v1684
          %v1749 = vtanh.pop %v1685
          %v1750 = vtanh.pop %v1686
          %v1751 = vtanh.pop %v1687
          %v1752 = vtanh.pop %v1688
          %v1753 = vtanh.pop %v1689
          %v1754 = vtanh.pop %v1690
          %v1755 = vtanh.pop %v1691
          %v1756 = vtanh.pop %v1692
          %v1757 = vtanh.pop %v1693
          %1758 = vst [vmem:[%s304] sm:$0xff] %v1694
          %1759 = vst [vmem:[%s304 + $0x8] sm:$0xff] %v1695
          %1760 = vst [vmem:[%s304 + $0x10] sm:$0xff] %v1696
          %1761 = vst [vmem:[%s304 + $0x18] sm:$0xff] %v1697
          %1762 = vst [vmem:[%s304 + $0x20] sm:$0xff] %v1698
          %1763 = vst [vmem:[%s304 + $0x28] sm:$0xff] %v1699
          %1764 = vst [vmem:[%s304 + $0x30] sm:$0xff] %v1700
          %1765 = vst [vmem:[%s304 + $0x38] sm:$0xff] %v1701
          %1766 = vst [vmem:[%s304 + $0x40] sm:$0xff] %v1702
          %1767 = vst [vmem:[%s304 + $0x48] sm:$0xff] %v1703
          %1768 = vst [vmem:[%s304 + $0x50] sm:$0xff] %v1704
          %1769 = vst [vmem:[%s304 + $0x58] sm:$0xff] %v1705
          %1770 = vst [vmem:[%s304 + $0x60] sm:$0xff] %v1706
          %1771 = vst [vmem:[%s304 + $0x68] sm:$0xff] %v1707
          %1772 = vst [vmem:[%s304 + $0x70] sm:$0xff] %v1708
          %1773 = vst [vmem:[%s304 + $0x78] sm:$0xff] %v1709
          %1774 = vst [vmem:[%s304 + $0x80] sm:$0xff] %v1710
          %1775 = vst [vmem:[%s304 + $0x88] sm:$0xff] %v1711
          %1776 = vst [vmem:[%s304 + $0x90] sm:$0xff] %v1712
          %1777 = vst [vmem:[%s304 + $0x98] sm:$0xff] %v1713
          %1778 = vst [vmem:[%s304 + $0xa0] sm:$0xff] %v1714
          %1779 = vst [vmem:[%s304 + $0xa8] sm:$0xff] %v1715
          %1780 = vst [vmem:[%s304 + $0xb0] sm:$0xff] %v1716
          %1781 = vst [vmem:[%s304 + $0xb8] sm:$0xff] %v1717
          %1782 = vst [vmem:[%s304 + $0xc0] sm:$0xff] %v1718
          %1783 = vst [vmem:[%s304 + $0xc8] sm:$0xff] %v1719
          %1784 = vst [vmem:[%s304 + $0xd0] sm:$0xff] %v1720
          %1785 = vst [vmem:[%s304 + $0xd8] sm:$0xff] %v1721
          %1786 = vst [vmem:[%s304 + $0xe0] sm:$0xff] %v1722
          %1787 = vst [vmem:[%s304 + $0xe8] sm:$0xff] %v1723
          %1788 = vst [vmem:[%s304 + $0xf0] sm:$0xff] %v1724
          %1789 = vst [vmem:[%s304 + $0xf8] sm:$0xff] %v1725
          %1790 = vst [vmem:[%s304 + $0x100] sm:$0xff] %v1726
          %1791 = vst [vmem:[%s304 + $0x108] sm:$0xff] %v1727
          %1792 = vst [vmem:[%s304 + $0x110] sm:$0xff] %v1728
          %1793 = vst [vmem:[%s304 + $0x118] sm:$0xff] %v1729
          %1794 = vst [vmem:[%s304 + $0x120] sm:$0xff] %v1730
          %1795 = vst [vmem:[%s304 + $0x128] sm:$0xff] %v1731
          %1796 = vst [vmem:[%s304 + $0x130] sm:$0xff] %v1732
          %1797 = vst [vmem:[%s304 + $0x138] sm:$0xff] %v1733
          %1798 = vst [vmem:[%s304 + $0x140] sm:$0xff] %v1734
          %1799 = vst [vmem:[%s304 + $0x148] sm:$0xff] %v1735
          %1800 = vst [vmem:[%s304 + $0x150] sm:$0xff] %v1736
          %1801 = vst [vmem:[%s304 + $0x158] sm:$0xff] %v1737
          %1802 = vst [vmem:[%s304 + $0x160] sm:$0xff] %v1738
          %1803 = vst [vmem:[%s304 + $0x168] sm:$0xff] %v1739
          %1804 = vst [vmem:[%s304 + $0x170] sm:$0xff] %v1740
          %1805 = vst [vmem:[%s304 + $0x178] sm:$0xff] %v1741
          %1806 = vst [vmem:[%s304 + $0x180] sm:$0xff] %v1742
          %1807 = vst [vmem:[%s304 + $0x188] sm:$0xff] %v1743
          %1808 = vst [vmem:[%s304 + $0x190] sm:$0xff] %v1744
          %1809 = vst [vmem:[%s304 + $0x198] sm:$0xff] %v1745
          %1810 = vst [vmem:[%s304 + $0x1a0] sm:$0xff] %v1746
          %1811 = vst [vmem:[%s304 + $0x1a8] sm:$0xff] %v1747
          %1812 = vst [vmem:[%s304 + $0x1b0] sm:$0xff] %v1748
          %1813 = vst [vmem:[%s304 + $0x1b8] sm:$0xff] %v1749
          %1814 = vst [vmem:[%s304 + $0x1c0] sm:$0xff] %v1750
          %1815 = vst [vmem:[%s304 + $0x1c8] sm:$0xff] %v1751
          %1816 = vst [vmem:[%s304 + $0x1d0] sm:$0xff] %v1752
          %1817 = vst [vmem:[%s304 + $0x1d8] sm:$0xff] %v1753
          %1818 = vst [vmem:[%s304 + $0x1e0] sm:$0xff] %v1754
          %1819 = vst [vmem:[%s304 + $0x1e8] sm:$0xff] %v1755
          %1820 = vst [vmem:[%s304 + $0x1f0] sm:$0xff] %v1756
          %1821 = vst [vmem:[%s304 + $0x1f8] sm:$0xff] %v1757
        $region64: #{tpu_custom_call.1} parent=35 // pred_fallthru
          _
        %s1822 = sand.u32 %s146, 1
        %s1823 = scalar_lea.sflag [#allocation6], %s1822
        %s1824 = sand.u32 %s146, 1
        %s1825 = smul.addr %s1824, 512
        %s1826 = scalar_lea.vmem [#allocation12], %s1825
        // Predicated region
        $region65: #{tpu_custom_call.1} parent=35 // pred_check
          %p1827 = pneg %p156
        $region66: #{tpu_custom_call.1} parent=35 // pred_check_branch
          %1829 = sbr.rel (%p1827) target = $region68
        $region67: #{tpu_custom_call.1} parent=35 // pred_region
          %s1830 = smul.u32 64, %s34
          %s1832 = ssub.s32 8192, 8192
          %1833 = vsyncadd %s1823, %s1832
          %s1834 = smul.addr %s1830, 128
          %s1835 = scalar_lea.hbm %s5, %s1834
          %s1836 = sshll.u32 %s1826, 4
          %s1837 = int_to_ptr.vmem [resolvable:$true] %s1836
          %1842 = dma.vmem_to_hbm [thread:$0]  %s1837, 8192, %s1835, %s1823, 128, 128, 8
        $region68: #{tpu_custom_call.1} parent=35 // pred_fallthru
          _
      $region36: #{tpu_custom_call.1} parent=5 // pred_fallthru
        _
      %p1843 = scmp.le.s32.totalorder 2, %s25
      // Predicated region
      $region69: #{tpu_custom_call.1} parent=5 // pred_check
        %p1844 = pneg %p1843
      $region70: #{tpu_custom_call.1} parent=5 // pred_check_branch
        %1846 = sbr.rel (%p1844) target = $region72
      $region71: #{tpu_custom_call.1} parent=5 // pred_region
        %s1847 = ssub.s32 %s25, 2
        // Predicated region
        $region73: #{tpu_custom_call.1} parent=71 // pred_check
          %p1848 = pneg %p162
        $region74: #{tpu_custom_call.1} parent=71 // pred_check_branch
          %1850 = sbr.rel (%p1848) target = $region76
        $region75: #{tpu_custom_call.1} parent=71 // pred_region
          %s1851 = sand.u32 %s147, 1
          %s1852 = scalar_lea.sflag [#allocation6], %s1851
          %s1853 = sand.u32 %s147, 1
          %s1854 = smul.addr %s1853, 512
          %s1855 = scalar_lea.vmem [#allocation12], %s1854
          %1856 = dma.done %s1852, 8192
        $region76: #{tpu_custom_call.1} parent=71 // pred_fallthru
          _
      $region72: #{tpu_custom_call.1} parent=5 // pred_fallthru
        _
    $region6: #{tpu_custom_call.1} parent=1 // loop_footer
      %s29 = sadd.s32 1, %s25
    $region7: #{tpu_custom_call.1} parent=1 // loop_footer_branch
      %24 = sbr.rel target = $region3
    $region8: #{tpu_custom_call.1} parent=1 // loop_exit
      _
    %1857 = vsyncpa [#allocation5], 1
    %s1858 = scalar_lea.sflag [#allocation5], 1
    %1859 = vsyncpa %s1858, 1
    %1860 = vsyncpa [#allocation8], 1
    %s1861 = scalar_lea.sflag [#allocation8], 1
    %1862 = vsyncpa %s1861, 1
    %1863 = vsyncpa [#allocation11], 1
    %1864 = vsyncpa [#allocation6], 1
    %s1865 = scalar_lea.sflag [#allocation6], 1
    %1866 = vsyncpa %s1865, 1

</llo_original>
